<compile_context>
chip_gen: v7x
topology: tpu7x:2x2x1
jax: 0.10.0
libtpu: 0.0.40
codegen_flags: <defaults>
</compile_context>

<pallas_src>
import jax
import jax.numpy as jnp
import numpy as np
from jax.experimental import pallas as pl
from jax.experimental.pallas import tpu as pltpu

NUM_HEADS = 4
NEG_SLOPE = 0.2        # dgl GATConv default LeakyReLU slope
NEG_BIG = -1e30


def project_kernel(h_ref, wa_ref, wf_ref, er_ref, elt_ref, zw_ref):
    """Per node-row tile: attention terms (er, transposed el) and folded values zw[h] = h @ wf[h]."""
    hf = h_ref[...]                                                   # (T, Fin) f32
    # all-head attention terms in one small MXU matmul (no per-head VPU/XLU reductions)
    e = jnp.dot(hf, wa_ref[...], preferred_element_type=jnp.float32)  # (T, 2H)
    er_ref[...] = e[:, NUM_HEADS:]                                    # (T, H)  dst (attn_r) terms
    # transpose the src (attn_l) terms ONCE here (small (T,H)->(H,T) XLU op) so kernel 2's
    # per-head loop needs no transposes and gets a lane-dense broadcast row.
    elt_ref[...] = e[:, :NUM_HEADS].T                                 # (H, T)
    hb = hf.astype(jnp.bfloat16)
    for head in range(NUM_HEADS):
        zw = jnp.dot(hb, wf_ref[head], preferred_element_type=jnp.float32)   # (T, D_out)
        zw_ref[head] = zw.astype(jnp.bfloat16)


def attn_agg_kernel(er_ref, elt_ref, zw_ref, adj_ref, h_ref, b_ref, out_ref, alpha_ref):
    """Per destination-row tile: masked edge-softmax + fused aggregation + bias + ELU + residual."""
    n_src = adj_ref.shape[1]
    edge = adj_ref[...] > 0                    # int8 tile -> bool mask; no f32 widen pass
    e_dst = er_ref[...]                        # (T, H)  attn_r terms for this dst tile
    e_src = elt_ref[...]                       # (H, N)  attn_l terms, already transposed

    for head in range(NUM_HEADS):
        er = e_dst[:, head:head + 1]           # (T, 1)
        el = e_src[head:head + 1, :]           # (1, N)  lane-dense, no XLU in the loop
        raw = er + el                          # (T, N)
        # LeakyReLU + edge mask folded into one maximum + one select
        s = jnp.where(edge, jnp.maximum(raw, NEG_SLOPE * raw), NEG_BIG)
        m = jnp.max(s, axis=1, keepdims=True)                          # (T, 1)
        # keep the post-exp select: zero-in-degree rows must produce alpha == 0 (DGL semantics)
        p = jnp.where(edge, jnp.exp(s - m), 0.0)
        denom = jnp.sum(p, axis=1, keepdims=True)
        inv = pl.reciprocal(jnp.where(denom > 0.0, denom, 1.0), approx=True)
        # 128-aligned static-slice store into the fused-K scratch
        alpha_ref[:, head * n_src:(head + 1) * n_src] = (p * inv).astype(jnp.bfloat16)

    # one MXU matmul with K = H*N (4x fewer push/drain sequences than per-head K = N)
    y = jnp.dot(alpha_ref[...], zw_ref[...], preferred_element_type=jnp.float32)  # (T, D_out)
    y = y + b_ref[...]                                                 # folded GATConv+out_proj bias
    y = jnp.where(y > 0.0, y, jnp.exp(y) - 1.0)                        # ELU
    out_ref[...] = h_ref[...] + y                                      # residual (F_in == D_out)


def gat_layer(h, adj, w, al, ar, bgat, wp, bp, *, tile_n=None):
    n, f_in = h.shape
    hd = w.shape[1]
    d = hd // NUM_HEADS
    d_out = wp.shape[1]
    assert f_in == d_out, "residual connection requires input_dim == output_dim"
    two_h = 2 * NUM_HEADS

    # ---- per-generation VMEM budget (128 MiB on v5e/v6e, 64 MiB on v7x) ----
    try:
        info = pltpu.get_tpu_info()
        vmem_cap = getattr(info, "vmem_capacity_bytes", None) or (64 * 1024 * 1024)
    except Exception:
        vmem_cap = 64 * 1024 * 1024
    vmem_limit = min(int(0.75 * vmem_cap), 100 * 1024 * 1024)

    if tile_n is None:
        # larger dst-row tiles amortize per-grid-step overhead on 128 MiB-VMEM parts
        tile_n = 256 if (vmem_cap >= 100 * 1024 * 1024 and n >= 512) else 128

    # ---- pad N to a tile multiple (padded src rows get adj=0; padded dst rows sliced off) ----
    n_pad = ((n + tile_n - 1) // tile_n) * tile_n
    pad = n_pad - n
    if pad:
        h_p = jnp.pad(h, ((0, pad), (0, 0)))
        adj_p = jnp.pad(adj, ((0, pad), (0, pad)))
    else:
        h_p, adj_p = h, adj
    n_tiles = n_pad // tile_n

    # ---- host-side parameter folding (weights only) ----
    w_heads = w.reshape(f_in, NUM_HEADS, d)
    wa_l = jnp.einsum('fhd,hd->fh', w_heads, al)                      # (F_in, H)
    wa_r = jnp.einsum('fhd,hd->fh', w_heads, ar)                      # (F_in, H)
    wa = jnp.concatenate([wa_l, wa_r], axis=1).astype(jnp.float32)    # (F_in, 2H)
    wp_heads = wp.reshape(NUM_HEADS, d, d_out)
    wf = jnp.einsum('fhd,hde->hfe', w_heads, wp_heads).astype(jnp.bfloat16)   # (H, F_in, D_out)
    bias_fold = (bgat @ wp + bp).astype(jnp.float32)                  # (1, D_out)
    adj_i8 = (adj_p > 0).astype(jnp.int8)                             # 0/1; only compared, never on MXU

    cparams = pltpu.CompilerParams(
        dimension_semantics=("parallel",),          # shard row tiles across TCs (v7x megacore)
        vmem_limit_bytes=vmem_limit,
    )

    # ---- kernel 1: per-node projection (attention terms + folded values) ----
    er, elt, zw = pl.pallas_call(
        project_kernel,
        grid=(n_tiles,),
        in_specs=[
            pl.BlockSpec((tile_n, f_in), lambda i: (i, 0)),
            pl.BlockSpec((f_in, two_h), lambda i: (0, 0)),
            pl.BlockSpec((NUM_HEADS, f_in, d_out), lambda i: (0, 0, 0)),
        ],
        out_specs=[
            pl.BlockSpec((tile_n, NUM_HEADS), lambda i: (i, 0)),
            pl.BlockSpec((NUM_HEADS, tile_n), lambda i: (0, i)),
            pl.BlockSpec((NUM_HEADS, tile_n, d_out), lambda i: (0, i, 0)),
        ],
        out_shape=[
            jax.ShapeDtypeStruct((n_pad, NUM_HEADS), jnp.float32),
            jax.ShapeDtypeStruct((NUM_HEADS, n_pad), jnp.float32),
            jax.ShapeDtypeStruct((NUM_HEADS, n_pad, d_out), jnp.bfloat16),
        ],
        compiler_params=cparams,
    )(h_p, wa, wf)

    # leading-axis merge only -> layout-free reshape; kernel 2 consumes one (H*N, D_out) operand
    zw_flat = zw.reshape(NUM_HEADS * n_pad, d_out)

    # ---- kernel 2: dst-row-tiled attention softmax + fused aggregation + ELU + residual ----
    out = pl.pallas_call(
        attn_agg_kernel,
        grid=(n_tiles,),
        in_specs=[
            pl.BlockSpec((tile_n, NUM_HEADS), lambda i: (i, 0)),              # er for dst rows
            pl.BlockSpec((NUM_HEADS, n_pad), lambda i: (0, 0)),               # el (transposed), resident
            pl.BlockSpec((NUM_HEADS * n_pad, d_out), lambda i: (0, 0)),       # zw for all sources, resident
            pl.BlockSpec((tile_n, n_pad), lambda i: (i, 0)),                  # adjacency row tile (int8)
            pl.BlockSpec((tile_n, d_out), lambda i: (i, 0)),                  # residual input tile
            pl.BlockSpec((1, d_out), lambda i: (0, 0)),                       # folded bias
        ],
        out_specs=pl.BlockSpec((tile_n, d_out), lambda i: (i, 0)),
        out_shape=jax.ShapeDtypeStruct((n_pad, d_out), jnp.float32),
        scratch_shapes=[pltpu.VMEM((tile_n, NUM_HEADS * n_pad), jnp.bfloat16)],  # fused-K alpha buffer
        compiler_params=cparams,
    )(er, elt, zw_flat, adj_i8, h_p, bias_fold)
    return out[:n]


def gat_layer_ref(h, adj, w, al, ar, bgat, wp, bp):
    """Pure-JAX f32 reference (original formulation) for correctness checking."""
    z = h @ w
    hd_dim = z.shape[1] // NUM_HEADS
    outs = []
    for head in range(NUM_HEADS):
        z_h = z[:, head * hd_dim:(head + 1) * hd_dim]
        el = (z_h * al[head]).sum(1)
        er = (z_h * ar[head]).sum(1)
        s = er[:, None] + el[None, :]
        s = jnp.where(s > 0, s, NEG_SLOPE * s)
        s = jnp.where(adj > 0, s, NEG_BIG)
        p = jnp.exp(s - s.max(1, keepdims=True)) * adj
        denom = p.sum(1, keepdims=True)
        alpha = p / jnp.where(denom > 0, denom, 1.0)
        outs.append(alpha @ z_h)
    feat = jnp.concatenate(outs, axis=1) + bgat
    y = feat @ wp + bp
    y = jnp.where(y > 0, y, jnp.exp(y) - 1.0)
    return h + y


if __name__ == "__main__":
    N = 256           # number of nodes (2 destination-row tiles of 128)
    F_IN = 64         # input_dim
    D_OUT = 64        # output_dim (== per-head GATConv out dim); residual needs F_IN == D_OUT
    H = NUM_HEADS     # num_heads

    key = jax.random.PRNGKey(0)
    k = jax.random.split(key, 8)

    h = jax.random.normal(k[0], (N, F_IN), dtype=jnp.float32)

    # deterministic random graph with self-loops (dst-major dense adjacency)
    rand = jax.random.uniform(k[1], (N, N))
    adj = jnp.maximum((rand < 0.25).astype(jnp.float32), jnp.eye(N, dtype=jnp.float32))

    # GATConv parameters
    w = 0.1 * jax.random.normal(k[2], (F_IN, H * D_OUT), dtype=jnp.float32)
    al = 0.1 * jax.random.normal(k[3], (H, D_OUT), dtype=jnp.float32)
    ar = 0.1 * jax.random.normal(k[4], (H, D_OUT), dtype=jnp.float32)
    bgat = 0.01 * jax.random.normal(k[5], (1, H * D_OUT), dtype=jnp.float32)

    # out_proj parameters (stored as (in, out) so math is feat @ Wp + bp)
    wp = 0.1 * jax.random.normal(k[6], (H * D_OUT, D_OUT), dtype=jnp.float32)
    bp = 0.01 * jax.random.normal(k[7], (1, D_OUT), dtype=jnp.float32)

    out = gat_layer(h, adj, w, al, ar, bgat, wp, bp)
    out = jax.block_until_ready(out)

    ref = gat_layer_ref(h, adj, w, al, ar, bgat, wp, bp)
    # bf16 folded weights / bf16 alpha on the MXU + approximate reciprocal => looser tolerance
    np.testing.assert_allclose(np.asarray(out), np.asarray(ref), rtol=5e-2, atol=5e-2)

    print("KERNEL_OK")
</pallas_src>

<mosaic_0001>
module attributes {stable_mosaic.version = 11 : i64} {
  func.func @project_kernel(%arg0: i32, %arg1: memref<128x64xf32, #tpu.memory_space<vmem>>, %arg2: memref<64x8xf32, #tpu.memory_space<vmem>>, %arg3: memref<4x64x64xbf16, #tpu.memory_space<vmem>>, %arg4: memref<128x4xf32, #tpu.memory_space<vmem>>, %arg5: memref<4x128xf32, #tpu.memory_space<vmem>>, %arg6: memref<4x128x64xbf16, #tpu.memory_space<vmem>>) attributes {dimension_semantics = [#tpu.dimension_semantics<parallel>], iteration_bounds = array<i64: 2>, scalar_prefetch = 0 : i64, scratch_operands = 0 : i64, tpu.core_type = #tpu.core_type<tc>, window_params = [{transform_indices = @transform_0, window_bounds = array<i64: 128, 64>}, {pipeline_mode = #tpu.pipeline_mode<synchronous>, transform_indices = @transform_1, window_bounds = array<i64: 64, 8>}, {pipeline_mode = #tpu.pipeline_mode<synchronous>, transform_indices = @transform_2, window_bounds = array<i64: 4, 64, 64>}, {transform_indices = @transform_3, window_bounds = array<i64: 128, 4>}, {transform_indices = @transform_4, window_bounds = array<i64: 4, 128>}, {transform_indices = @transform_5, window_bounds = array<i64: 4, 128, 64>}]} {
    %c0 = arith.constant 0 : index
    %c0_0 = arith.constant 0 : index
    %0 = vector.load %arg1[%c0, %c0_0] : memref<128x64xf32, #tpu.memory_space<vmem>>, vector<128x64xf32>
    %c0_1 = arith.constant 0 : index
    %c0_2 = arith.constant 0 : index
    %1 = vector.load %arg2[%c0_1, %c0_2] : memref<64x8xf32, #tpu.memory_space<vmem>>, vector<64x8xf32>
    %cst = arith.constant dense<0.000000e+00> : vector<128x8xf32>
    %2 = tpu.matmul %0, %1, %cst {dimension_numbers = #tpu.dot_dimension_numbers<[1], [0], [0], [1], [0, 0, 1, 1], [], []>} : vector<128x64xf32>, vector<64x8xf32>, vector<128x8xf32> -> vector<128x8xf32>
    %3 = vector.extract_strided_slice %2 {offsets = [0, 4], sizes = [128, 4], strides = [1, 1]} : vector<128x8xf32> to vector<128x4xf32>
    %c0_3 = arith.constant 0 : index
    %c0_4 = arith.constant 0 : index
    %4 = vector.load %arg4[%c0_3, %c0_4] : memref<128x4xf32, #tpu.memory_space<vmem>>, vector<128x4xf32>
    tpu.vector_store %arg4[%c0_3, %c0_4], %3 {strides = array<i32>} : memref<128x4xf32, #tpu.memory_space<vmem>>, vector<128x4xf32>,
    %5 = vector.extract_strided_slice %2 {offsets = [0, 0], sizes = [128, 4], strides = [1, 1]} : vector<128x8xf32> to vector<128x4xf32>
    %6 = tpu.transpose %5, [1, 0] : vector<128x4xf32> -> vector<4x128xf32>
    %c0_5 = arith.constant 0 : index
    %c0_6 = arith.constant 0 : index
    %7 = vector.load %arg5[%c0_5, %c0_6] : memref<4x128xf32, #tpu.memory_space<vmem>>, vector<4x128xf32>
    tpu.vector_store %arg5[%c0_5, %c0_6], %6 {strides = array<i32>} : memref<4x128xf32, #tpu.memory_space<vmem>>, vector<4x128xf32>,
    %8 = arith.truncf %0 : vector<128x64xf32> to vector<128x64xbf16>
    %c0_7 = arith.constant 0 : index
    %c0_8 = arith.constant 0 : index
    %c0_9 = arith.constant 0 : index
    %9 = vector.load %arg3[%c0_7, %c0_8, %c0_9] : memref<4x64x64xbf16, #tpu.memory_space<vmem>>, vector<1x64x64xbf16>
    %10 = vector.shape_cast %9 : vector<1x64x64xbf16> to vector<64x64xbf16>
    %cst_10 = arith.constant dense<0.000000e+00> : vector<128x64xf32>
    %11 = tpu.matmul %8, %10, %cst_10 {dimension_numbers = #tpu.dot_dimension_numbers<[1], [0], [0], [1], [0, 0, 1, 1], [], []>} : vector<128x64xbf16>, vector<64x64xbf16>, vector<128x64xf32> -> vector<128x64xf32>
    %12 = arith.truncf %11 : vector<128x64xf32> to vector<128x64xbf16>
    %c0_11 = arith.constant 0 : index
    %c0_12 = arith.constant 0 : index
    %c0_13 = arith.constant 0 : index
    %13 = vector.load %arg6[%c0_11, %c0_12, %c0_13] : memref<4x128x64xbf16, #tpu.memory_space<vmem>>, vector<1x128x64xbf16>
    %14 = vector.shape_cast %13 : vector<1x128x64xbf16> to vector<128x64xbf16>
    %15 = vector.shape_cast %12 : vector<128x64xbf16> to vector<1x128x64xbf16>
    tpu.vector_store %arg6[%c0_11, %c0_12, %c0_13], %15 {strides = array<i32>} : memref<4x128x64xbf16, #tpu.memory_space<vmem>>, vector<1x128x64xbf16>,
    %c1 = arith.constant 1 : index
    %c0_14 = arith.constant 0 : index
    %c0_15 = arith.constant 0 : index
    %16 = vector.load %arg3[%c1, %c0_14, %c0_15] : memref<4x64x64xbf16, #tpu.memory_space<vmem>>, vector<1x64x64xbf16>
    %17 = vector.shape_cast %16 : vector<1x64x64xbf16> to vector<64x64xbf16>
    %cst_16 = arith.constant dense<0.000000e+00> : vector<128x64xf32>
    %18 = tpu.matmul %8, %17, %cst_16 {dimension_numbers = #tpu.dot_dimension_numbers<[1], [0], [0], [1], [0, 0, 1, 1], [], []>} : vector<128x64xbf16>, vector<64x64xbf16>, vector<128x64xf32> -> vector<128x64xf32>
    %19 = arith.truncf %18 : vector<128x64xf32> to vector<128x64xbf16>
    %c1_17 = arith.constant 1 : index
    %c0_18 = arith.constant 0 : index
    %c0_19 = arith.constant 0 : index
    %20 = vector.load %arg6[%c1_17, %c0_18, %c0_19] : memref<4x128x64xbf16, #tpu.memory_space<vmem>>, vector<1x128x64xbf16>
    %21 = vector.shape_cast %20 : vector<1x128x64xbf16> to vector<128x64xbf16>
    %22 = vector.shape_cast %19 : vector<128x64xbf16> to vector<1x128x64xbf16>
    tpu.vector_store %arg6[%c1_17, %c0_18, %c0_19], %22 {strides = array<i32>} : memref<4x128x64xbf16, #tpu.memory_space<vmem>>, vector<1x128x64xbf16>,
    %c2 = arith.constant 2 : index
    %c0_20 = arith.constant 0 : index
    %c0_21 = arith.constant 0 : index
    %23 = vector.load %arg3[%c2, %c0_20, %c0_21] : memref<4x64x64xbf16, #tpu.memory_space<vmem>>, vector<1x64x64xbf16>
    %24 = vector.shape_cast %23 : vector<1x64x64xbf16> to vector<64x64xbf16>
    %cst_22 = arith.constant dense<0.000000e+00> : vector<128x64xf32>
    %25 = tpu.matmul %8, %24, %cst_22 {dimension_numbers = #tpu.dot_dimension_numbers<[1], [0], [0], [1], [0, 0, 1, 1], [], []>} : vector<128x64xbf16>, vector<64x64xbf16>, vector<128x64xf32> -> vector<128x64xf32>
    %26 = arith.truncf %25 : vector<128x64xf32> to vector<128x64xbf16>
    %c2_23 = arith.constant 2 : index
    %c0_24 = arith.constant 0 : index
    %c0_25 = arith.constant 0 : index
    %27 = vector.load %arg6[%c2_23, %c0_24, %c0_25] : memref<4x128x64xbf16, #tpu.memory_space<vmem>>, vector<1x128x64xbf16>
    %28 = vector.shape_cast %27 : vector<1x128x64xbf16> to vector<128x64xbf16>
    %29 = vector.shape_cast %26 : vector<128x64xbf16> to vector<1x128x64xbf16>
    tpu.vector_store %arg6[%c2_23, %c0_24, %c0_25], %29 {strides = array<i32>} : memref<4x128x64xbf16, #tpu.memory_space<vmem>>, vector<1x128x64xbf16>,
    %c3 = arith.constant 3 : index
    %c0_26 = arith.constant 0 : index
    %c0_27 = arith.constant 0 : index
    %30 = vector.load %arg3[%c3, %c0_26, %c0_27] : memref<4x64x64xbf16, #tpu.memory_space<vmem>>, vector<1x64x64xbf16>
    %31 = vector.shape_cast %30 : vector<1x64x64xbf16> to vector<64x64xbf16>
    %cst_28 = arith.constant dense<0.000000e+00> : vector<128x64xf32>
    %32 = tpu.matmul %8, %31, %cst_28 {dimension_numbers = #tpu.dot_dimension_numbers<[1], [0], [0], [1], [0, 0, 1, 1], [], []>} : vector<128x64xbf16>, vector<64x64xbf16>, vector<128x64xf32> -> vector<128x64xf32>
    %33 = arith.truncf %32 : vector<128x64xf32> to vector<128x64xbf16>
    %c3_29 = arith.constant 3 : index
    %c0_30 = arith.constant 0 : index
    %c0_31 = arith.constant 0 : index
    %34 = vector.load %arg6[%c3_29, %c0_30, %c0_31] : memref<4x128x64xbf16, #tpu.memory_space<vmem>>, vector<1x128x64xbf16>
    %35 = vector.shape_cast %34 : vector<1x128x64xbf16> to vector<128x64xbf16>
    %36 = vector.shape_cast %33 : vector<128x64xbf16> to vector<1x128x64xbf16>
    tpu.vector_store %arg6[%c3_29, %c0_30, %c0_31], %36 {strides = array<i32>} : memref<4x128x64xbf16, #tpu.memory_space<vmem>>, vector<1x128x64xbf16>,
    return
  }
  func.func @transform_0(%arg0: i32) -> (i32, i32) {
    %c0_i32 = arith.constant 0 : i32
    %c0_i32_0 = arith.constant 0 : i32
    return %arg0, %c0_i32 : i32, i32
  }
  func.func @transform_1(%arg0: i32) -> (i32, i32) {
    %c0_i32 = arith.constant 0 : i32
    %c0_i32_0 = arith.constant 0 : i32
    %c0_i32_1 = arith.constant 0 : i32
    return %c0_i32, %c0_i32_0 : i32, i32
  }
  func.func @transform_2(%arg0: i32) -> (i32, i32, i32) {
    %c0_i32 = arith.constant 0 : i32
    %c0_i32_0 = arith.constant 0 : i32
    %c0_i32_1 = arith.constant 0 : i32
    %c0_i32_2 = arith.constant 0 : i32
    return %c0_i32, %c0_i32_0, %c0_i32_1 : i32, i32, i32
  }
  func.func @transform_3(%arg0: i32) -> (i32, i32) {
    %c0_i32 = arith.constant 0 : i32
    %c0_i32_0 = arith.constant 0 : i32
    return %arg0, %c0_i32 : i32, i32
  }
  func.func @transform_4(%arg0: i32) -> (i32, i32) {
    %c0_i32 = arith.constant 0 : i32
    %c0_i32_0 = arith.constant 0 : i32
    return %c0_i32, %arg0 : i32, i32
  }
  func.func @transform_5(%arg0: i32) -> (i32, i32, i32) {
    %c0_i32 = arith.constant 0 : i32
    %c0_i32_0 = arith.constant 0 : i32
    %c0_i32_1 = arith.constant 0 : i32
    return %c0_i32, %arg0, %c0_i32_0 : i32, i32, i32
  }
}

</mosaic_0001>

<llo_original>
// kernel: tpu_custom_call.1
$region0: #{tpu_custom_call.1}
  #allocation0 [shape = 'u32[]', space=smem, size = 0x4, offset = 0x4, fixed_abs, tag = 'smem constant byte address 0x4 - core index']
  #allocation1 [shape = 'u32[144,128]{1,0:T(1,128)}', space=vmem, size = 0x12000, scoped, tag = 'internal scratch']
  %s0 = inlined_call_operand.vmem [shape: f32[256,64], index: 0, kind: input, shape index: {}]
  %s1 = inlined_call_operand.vmem [shape: f32[64,8], index: 1, kind: input, shape index: {}]
  %s2 = inlined_call_operand.vmem [shape: bf16[4,64,64], index: 2, kind: input, shape index: {}]
  %s3 = inlined_call_operand.vmem [shape: f32[256,4], index: 3, kind: output, shape index: {0}]
  %s4 = inlined_call_operand.hbm [shape: f32[4,256], index: 4, kind: output, shape index: {1}]
  %s5 = inlined_call_operand.vmem [shape: bf16[4,256,64], index: 5, kind: output, shape index: {2}]
  %6 = xla_tuple %s3, %s4, %s5
  %s7 = sld [smem:[#allocation0]]
  $region98: #{tpu_custom_call.1} parent=0
    _
  %s9 = ssub.s32 1, %s7
  %s10 = scalar_select 0, %s9, %s7
  $region1: #{tpu_custom_call.1} parent=0
    #allocation2 [shape = 'u8[4096]{0}', space=vmem, size = 0x1000, scoped, tag = 'output window, operand 1']
    #allocation3 [shape = 's32[2]{0}', space=sflag, size = 0x8, scoped, tag = 'scoped memory for tpu_custom_call.1']
    #allocation4 [shape = 'u8[262144]{0}', space=vmem, size = 0x40000, scoped, tag = 'output window, operand 2']
    %11 = vsyncpa [#allocation3], 0
    %s12 = scalar_lea.sflag [#allocation3], 1
    %13 = vsyncpa %s12, 0
    loop: start=0, step=1, limit=4
    $region2: #{tpu_custom_call.1} parent=1 // loop_pre_header
      _
    $region3: #{tpu_custom_call.1} parent=1 // loop_header
      %s15 = sphi 0, %s19
      %p16 = scmp.ge.s32.totalorder %s15, 4
      %s25 = sphi 0, %s27
      %s28 = sphi 0, %s25
      %s29 = sphi 0, %s28
      %s45 = sphi 0, %s29
      %s49 = sphi 0, %s49
      %s51 = sphi 0, %s49
      %s52 = sphi 0, %s51
      %s66 = sphi 0, %s52
      %s70 = sphi 0, %s70
      %s72 = sphi 0, %s70
      %s73 = sphi 0, %s72
      %s87 = sphi 0, %s73
      %s93 = sphi 0, %s95
      %s96 = sphi 0, %s93
      %s97 = sphi 0, %s96
      %s113 = sphi 0, %s97
      %s119 = sphi 0, %s121
      %s122 = sphi 0, %s119
      %s123 = sphi 0, %s122
      %s139 = sphi 0, %s123
      %s145 = sphi 0, %s147
      %s148 = sphi 0, %s145
      %s149 = sphi 0, %s148
      %s165 = sphi 0, %s149
    $region4: #{tpu_custom_call.1} parent=1 // loop_header_branch
      %18 = sbr.rel (%p16) target = $region8
    $region5: #{tpu_custom_call.1} parent=1 // loop_body
      %s20 = ssub.s32 %s15, 1
      %s21 = ssub.s32 %s15, 2
      %s22 = sadd.s32 %s15, 1
      %s23 = ssub.s32 %s15, %s22
      %p24 = scmp.eq.s32.totalorder %s23, 0
      %s26 = sadd.s32 %s25, 1
      %s27 = scalar_select %p24, %s25, %s26
      %p30 = pneg %p24
      %p31 = scmp.eq.s32.totalorder %s15, 1
      %p32 = por %p30, %p31
      %p33 = scmp.ne.s32.totalorder %s25, %s28
      %p34 = scmp.eq.s32.totalorder %s15, 0
      %p35 = por %p33, %p34
      %p36 = scmp.ne.s32.totalorder %s25, %s28
      %p37 = scmp.eq.s32.totalorder %s20, 1
      %p38 = por %p36, %p37
      %p39 = scmp.ne.s32.totalorder %s28, %s29
      %p40 = scmp.eq.s32.totalorder %s20, 0
      %p41 = por %p39, %p40
      %p42 = scmp.ne.s32.totalorder %s28, %s29
      %p43 = scmp.eq.s32.totalorder %s21, 1
      %p44 = por %p42, %p43
      %p46 = scmp.ne.s32.totalorder %s29, %s45
      %p47 = scmp.eq.s32.totalorder %s21, 0
      %p48 = por %p46, %p47
      %s50 = sadd.s32 %s49, 1
      %p53 = scmp.eq.s32.totalorder %s15, 1
      %p54 = scmp.ne.s32.totalorder %s49, %s51
      %p55 = scmp.eq.s32.totalorder %s15, 0
      %p56 = por %p54, %p55
      %p57 = scmp.ne.s32.totalorder %s49, %s51
      %p58 = scmp.eq.s32.totalorder %s20, 1
      %p59 = por %p57, %p58
      %p60 = scmp.ne.s32.totalorder %s51, %s52
      %p61 = scmp.eq.s32.totalorder %s20, 0
      %p62 = por %p60, %p61
      %p63 = scmp.ne.s32.totalorder %s51, %s52
      %p64 = scmp.eq.s32.totalorder %s21, 1
      %p65 = por %p63, %p64
      %p67 = scmp.ne.s32.totalorder %s52, %s66
      %p68 = scmp.eq.s32.totalorder %s21, 0
      %p69 = por %p67, %p68
      %s71 = sadd.s32 %s70, 1
      %p74 = scmp.eq.s32.totalorder %s15, 1
      %p75 = scmp.ne.s32.totalorder %s70, %s72
      %p76 = scmp.eq.s32.totalorder %s15, 0
      %p77 = por %p75, %p76
      %p78 = scmp.ne.s32.totalorder %s70, %s72
      %p79 = scmp.eq.s32.totalorder %s20, 1
      %p80 = por %p78, %p79
      %p81 = scmp.ne.s32.totalorder %s72, %s73
      %p82 = scmp.eq.s32.totalorder %s20, 0
      %p83 = por %p81, %p82
      %p84 = scmp.ne.s32.totalorder %s72, %s73
      %p85 = scmp.eq.s32.totalorder %s21, 1
      %p86 = por %p84, %p85
      %p88 = scmp.ne.s32.totalorder %s73, %s87
      %p89 = scmp.eq.s32.totalorder %s21, 0
      %p90 = por %p88, %p89
      %s91 = ssub.s32 %s15, %s22
      %p92 = scmp.eq.s32.totalorder %s91, 0
      %s94 = sadd.s32 %s93, 1
      %s95 = scalar_select %p92, %s93, %s94
      %p98 = pneg %p92
      %p99 = scmp.eq.s32.totalorder %s15, 1
      %p100 = por %p98, %p99
      %p101 = scmp.ne.s32.totalorder %s93, %s96
      %p102 = scmp.eq.s32.totalorder %s15, 0
      %p103 = por %p101, %p102
      %p104 = scmp.ne.s32.totalorder %s93, %s96
      %p105 = scmp.eq.s32.totalorder %s20, 1
      %p106 = por %p104, %p105
      %p107 = scmp.ne.s32.totalorder %s96, %s97
      %p108 = scmp.eq.s32.totalorder %s20, 0
      %p109 = por %p107, %p108
      %p110 = scmp.ne.s32.totalorder %s96, %s97
      %p111 = scmp.eq.s32.totalorder %s21, 1
      %p112 = por %p110, %p111
      %p114 = scmp.ne.s32.totalorder %s97, %s113
      %p115 = scmp.eq.s32.totalorder %s21, 0
      %p116 = por %p114, %p115
      %s117 = ssub.s32 %s15, %s22
      %p118 = scmp.eq.s32.totalorder %s117, 0
      %s120 = sadd.s32 %s119, 1
      %s121 = scalar_select %p118, %s119, %s120
      %p124 = pneg %p118
      %p125 = scmp.eq.s32.totalorder %s15, 1
      %p126 = por %p124, %p125
      %p127 = scmp.ne.s32.totalorder %s119, %s122
      %p128 = scmp.eq.s32.totalorder %s15, 0
      %p129 = por %p127, %p128
      %p130 = scmp.ne.s32.totalorder %s119, %s122
      %p131 = scmp.eq.s32.totalorder %s20, 1
      %p132 = por %p130, %p131
      %p133 = scmp.ne.s32.totalorder %s122, %s123
      %p134 = scmp.eq.s32.totalorder %s20, 0
      %p135 = por %p133, %p134
      %p136 = scmp.ne.s32.totalorder %s122, %s123
      %p137 = scmp.eq.s32.totalorder %s21, 1
      %p138 = por %p136, %p137
      %p140 = scmp.ne.s32.totalorder %s123, %s139
      %p141 = scmp.eq.s32.totalorder %s21, 0
      %p142 = por %p140, %p141
      %s143 = ssub.s32 %s15, %s22
      %p144 = scmp.eq.s32.totalorder %s143, 0
      %s146 = sadd.s32 %s145, 1
      %s147 = scalar_select %p144, %s145, %s146
      %p150 = pneg %p144
      %p151 = scmp.eq.s32.totalorder %s15, 1
      %p152 = por %p150, %p151
      %p153 = scmp.ne.s32.totalorder %s145, %s148
      %p154 = scmp.eq.s32.totalorder %s15, 0
      %p155 = por %p153, %p154
      %p156 = scmp.ne.s32.totalorder %s145, %s148
      %p157 = scmp.eq.s32.totalorder %s20, 1
      %p158 = por %p156, %p157
      %p159 = scmp.ne.s32.totalorder %s148, %s149
      %p160 = scmp.eq.s32.totalorder %s20, 0
      %p161 = por %p159, %p160
      %p162 = scmp.ne.s32.totalorder %s148, %s149
      %p163 = scmp.eq.s32.totalorder %s21, 1
      %p164 = por %p162, %p163
      %p166 = scmp.ne.s32.totalorder %s149, %s165
      %p167 = scmp.eq.s32.totalorder %s21, 0
      %p168 = por %p166, %p167
      %p169 = scmp.le.s32.totalorder 1, %s15
      %p170 = scmp.lt.s32.totalorder %s15, 3
      %p171 = pnand %p169, %p170
      %p172 = pneg %p171
      // Predicated region
      $region9: #{tpu_custom_call.1} parent=5 // pred_check
        _
      $region10: #{tpu_custom_call.1} parent=5 // pred_check_branch
        %174 = sbr.rel (%p171) target = $region12
      $region11: #{tpu_custom_call.1} parent=5 // pred_region
        %s175 = ssub.s32 %s15, 1
        // Predicated region
        $region13: #{tpu_custom_call.1} parent=11 // pred_check
          %p176 = pneg %p62
        $region14: #{tpu_custom_call.1} parent=11 // pred_check_branch
          %178 = sbr.rel (%p176) target = $region16
        $region15: #{tpu_custom_call.1} parent=11 // pred_region
          _
        $region16: #{tpu_custom_call.1} parent=11 // pred_fallthru
          _
        // Predicated region
        $region17: #{tpu_custom_call.1} parent=11 // pred_check
          %p179 = pneg %p83
        $region18: #{tpu_custom_call.1} parent=11 // pred_check_branch
          %181 = sbr.rel (%p179) target = $region20
        $region19: #{tpu_custom_call.1} parent=11 // pred_region
          _
        $region20: #{tpu_custom_call.1} parent=11 // pred_fallthru
          _
      $region12: #{tpu_custom_call.1} parent=5 // pred_fallthru
        _
      %p182 = scmp.lt.s32.totalorder %s15, 2
      // Predicated region
      $region21: #{tpu_custom_call.1} parent=5 // pred_check
        %p183 = pneg %p182
      $region22: #{tpu_custom_call.1} parent=5 // pred_check_branch
        %185 = sbr.rel (%p183) target = $region24
      $region23: #{tpu_custom_call.1} parent=5 // pred_region
        // Predicated region
        $region25: #{tpu_custom_call.1} parent=23 // pred_check
          %p186 = pneg %p35
        $region26: #{tpu_custom_call.1} parent=23 // pred_check_branch
          %188 = sbr.rel (%p186) target = $region28
        $region27: #{tpu_custom_call.1} parent=23 // pred_region
          %s189 = smul.u32 16, %s15
          %p190 = scmp.lt.s32.totalorder %s189, 31
          %s191 = scalar_select %p190, %s189, 31
          %s192 = smul.addr %s191, 8
          %s193 = scalar_lea.vmem %s0, %s192
          %s194 = smul.u32 16, %s15
        $region28: #{tpu_custom_call.1} parent=23 // pred_fallthru
          _
      $region24: #{tpu_custom_call.1} parent=5 // pred_fallthru
        _
      %p195 = scmp.le.s32.totalorder 1, %s15
      %p196 = scmp.lt.s32.totalorder %s15, 3
      %p197 = pnand %p195, %p196
      %p198 = pneg %p197
      // Predicated region
      $region29: #{tpu_custom_call.1} parent=5 // pred_check
        _
      $region30: #{tpu_custom_call.1} parent=5 // pred_check_branch
        %200 = sbr.rel (%p197) target = $region32
      $region31: #{tpu_custom_call.1} parent=5 // pred_region
        %s201 = ssub.s32 %s15, 1
        %s202 = smul.u32 16, %s20
        %p203 = scmp.lt.s32.totalorder %s202, 31
        %s204 = scalar_select %p203, %s202, 31
        %s205 = smul.addr %s204, 8
        %s206 = scalar_lea.vmem %s0, %s205
        %p207 = pneg %p41
        %p208 = pneg %p38
        %p209 = pneg %p62
        %p210 = pneg %p59
        %p211 = pneg %p83
        %p212 = pneg %p80
        %p213 = pneg %p109
        %p214 = pneg %p106
        %s215 = smul.u32 16, %s20
        %p216 = scmp.lt.s32.totalorder %s215, 31
        %s217 = scalar_select %p216, %s215, 31
        %s218 = smul.addr %s217, 8
        %s219 = scalar_lea.vmem %s3, %s218
        %p220 = pneg %p135
        %p221 = pneg %p132
        %s222 = sand.u32 %s122, 1
        %s223 = scalar_lea.sflag [#allocation3], %s222
        %s224 = sand.u32 %s122, 1
        %s225 = smul.addr %s224, 4
        %s226 = scalar_lea.vmem [#allocation2], %s225
        %p227 = pneg %p161
        %p228 = pneg %p158
        %s229 = sand.u32 %s148, 1
        %s230 = sand.u32 %s148, 1
        %s231 = smul.addr %s230, 256
        %s232 = scalar_lea.vmem [#allocation4], %s231
        %s233 = smul.u32 16, %s20
        %p234 = scmp.lt.s32.totalorder %s233, 31
        %s235 = scalar_select %p234, %s233, 31
        %s236 = smul.addr %s235, 8
        %s237 = scalar_lea.vmem %s0, %s236
        %s238 = smul.u32 16, %s20
        %s239 = smul.u32 16, %s20
        %p240 = scmp.lt.s32.totalorder %s239, 31
        %s241 = scalar_select %p240, %s239, 31
        %s242 = smul.addr %s241, 8
        %s243 = scalar_lea.vmem %s3, %s242
        %s244 = smul.u32 16, %s20
        %s245 = smul.u32 16, %s20
        %v247 = vld [vmem:[%s237] sm:$0xff]
        %v248 = vld [vmem:[%s237 + $0x8] sm:$0xff]
        %v249 = vld [vmem:[%s237 + $0x10] sm:$0xff]
        %v250 = vld [vmem:[%s237 + $0x18] sm:$0xff]
        %v251 = vld [vmem:[%s237 + $0x20] sm:$0xff]
        %v252 = vld [vmem:[%s237 + $0x28] sm:$0xff]
        %v253 = vld [vmem:[%s237 + $0x30] sm:$0xff]
        %v254 = vld [vmem:[%s237 + $0x38] sm:$0xff]
        %v255 = vld [vmem:[%s237 + $0x40] sm:$0xff]
        %v256 = vld [vmem:[%s237 + $0x48] sm:$0xff]
        %v257 = vld [vmem:[%s237 + $0x50] sm:$0xff]
        %v258 = vld [vmem:[%s237 + $0x58] sm:$0xff]
        %v259 = vld [vmem:[%s237 + $0x60] sm:$0xff]
        %v260 = vld [vmem:[%s237 + $0x68] sm:$0xff]
        %v261 = vld [vmem:[%s237 + $0x70] sm:$0xff]
        %v262 = vld [vmem:[%s237 + $0x78] sm:$0xff]
        %v263 = vld [vmem:[%s1] sm:$0xff]
        %v264 = vld [vmem:[%s1 + $0x8] sm:$0xff]
        %v265 = vld [vmem:[%s1 + $0x10] sm:$0xff]
        %v266 = vld [vmem:[%s1 + $0x18] sm:$0xff]
        %v267 = vld [vmem:[%s1 + $0x20] sm:$0xff]
        %v268 = vld [vmem:[%s1 + $0x28] sm:$0xff]
        %v269 = vld [vmem:[%s1 + $0x30] sm:$0xff]
        %v270 = vld [vmem:[%s1 + $0x38] sm:$0xff]
        %vm271 = vcmask 523264
        %v273 = vsel %vm271, %v247, 0
        %v276 = vsel %vm271, %v248, 0
        %v279 = vsel %vm271, %v249, 0
        %v282 = vsel %vm271, %v250, 0
        %v285 = vsel %vm271, %v251, 0
        %v288 = vsel %vm271, %v252, 0
        %v291 = vsel %vm271, %v253, 0
        %v294 = vsel %vm271, %v254, 0
        %v297 = vsel %vm271, %v255, 0
        %v300 = vsel %vm271, %v256, 0
        %v303 = vsel %vm271, %v257, 0
        %v306 = vsel %vm271, %v258, 0
        %v309 = vsel %vm271, %v259, 0
        %v312 = vsel %vm271, %v260, 0
        %v315 = vsel %vm271, %v261, 0
        %v318 = vsel %vm271, %v262, 0
        %320 = vmatprep.subr.mxu0 0.0
        %321 = vmatpush1.msra.mxu0 %v263
        %322 = vmatprep.subr.mxu0 0.0
        %323 = vmatpush1.msra.mxu0 %v264
        %324 = vmatprep.subr.mxu0 0.0
        %325 = vmatpush1.msra.mxu0 %v265
        %326 = vmatprep.subr.mxu0 0.0
        %327 = vmatpush1.msra.mxu0 %v266
        %328 = vmatprep.subr.mxu0 0.0
        %329 = vmatpush1.msra.mxu0 %v267
        %330 = vmatprep.subr.mxu0 0.0
        %331 = vmatpush1.msra.mxu0 %v268
        %332 = vmatprep.subr.mxu0 0.0
        %333 = vmatpush1.msra.mxu0 %v269
        %334 = vmatprep.subr.mxu0 0.0
        %335 = vmatpush1.msra.mxu0 %v270
        %336 = vmatprep.subr.mxu0 0.0
        %337 = vmatpush1.msra.mxu0 0.0
        %338 = vmatprep.subr.mxu0 0.0
        %339 = vmatpush1.msra.mxu0 0.0
        %340 = vmatprep.subr.mxu0 0.0
        %341 = vmatpush1.msra.mxu0 0.0
        %342 = vmatprep.subr.mxu0 0.0
        %343 = vmatpush1.msra.mxu0 0.0
        %344 = vmatprep.subr.mxu0 0.0
        %345 = vmatpush1.msra.mxu0 0.0
        %346 = vmatprep.subr.mxu0 0.0
        %347 = vmatpush1.msra.mxu0 0.0
        %348 = vmatprep.subr.mxu0 0.0
        %349 = vmatpush1.msra.mxu0 0.0
        %350 = vmatprep.subr.mxu0 0.0
        %351 = vmatpush1.msra.mxu0 0.0
        %352 = vmatprep.subr.mxu0 0.0
        %353 = vmatpush1.msra.mxu0 0.0
        %354 = vmatprep.subr.mxu0 0.0
        %355 = vmatpush1.msra.mxu0 0.0
        %356 = vmatprep.subr.mxu0 0.0
        %357 = vmatpush1.msra.mxu0 0.0
        %358 = vmatprep.subr.mxu0 0.0
        %359 = vmatpush1.msra.mxu0 0.0
        %360 = vmatprep.subr.mxu0 0.0
        %361 = vmatpush1.msra.mxu0 0.0
        %362 = vmatprep.subr.mxu0 0.0
        %363 = vmatpush1.msra.mxu0 0.0
        %364 = vmatprep.subr.mxu0 0.0
        %365 = vmatpush1.msra.mxu0 0.0
        %366 = vmatprep.subr.mxu0 0.0
        %367 = vmatpush1.msra.mxu0 0.0
        %368 = vmatprep.subr.mxu0 0.0
        %369 = vmatpush1.msra.mxu0 0.0
        %370 = vmatprep.subr.mxu0 0.0
        %371 = vmatpush1.msra.mxu0 0.0
        %372 = vmatprep.subr.mxu0 0.0
        %373 = vmatpush1.msra.mxu0 0.0
        %374 = vmatprep.subr.mxu0 0.0
        %375 = vmatpush1.msra.mxu0 0.0
        %376 = vmatprep.subr.mxu0 0.0
        %377 = vmatpush1.msra.mxu0 0.0
        %378 = vmatprep.subr.mxu0 0.0
        %379 = vmatpush1.msra.mxu0 0.0
        %380 = vmatprep.subr.mxu0 0.0
        %381 = vmatpush1.msra.mxu0 0.0
        %382 = vmatprep.subr.mxu0 0.0
        %383 = vmatpush1.msra.mxu0 0.0
        %384 = vmatprep.mubr.f32.mxu0 0.0
        %385 = vmatmul.mubr.f32.gmra.mrb[0].mxu0 %v273
        %v386 = vpop.f32.mrb[0].mxu0
        %v387 = vadd.f32 0.0, %v386
        %v388 = vpop.f32.mrb[0].mxu0
        %389 = vmatprep.mubr.f32.mxu0 0.0
        %390 = vmatmul.mubr.f32.gmra.mrb[0].mxu0 %v276
        %v391 = vpop.f32.mrb[0].mxu0
        %v392 = vadd.f32 0.0, %v391
        %v393 = vpop.f32.mrb[0].mxu0
        %394 = vmatprep.mubr.f32.mxu0 0.0
        %395 = vmatmul.mubr.f32.gmra.mrb[0].mxu0 %v279
        %v396 = vpop.f32.mrb[0].mxu0
        %v397 = vadd.f32 0.0, %v396
        %v398 = vpop.f32.mrb[0].mxu0
        %399 = vmatprep.mubr.f32.mxu0 0.0
        %400 = vmatmul.mubr.f32.gmra.mrb[0].mxu0 %v282
        %v401 = vpop.f32.mrb[0].mxu0
        %v402 = vadd.f32 0.0, %v401
        %v403 = vpop.f32.mrb[0].mxu0
        %404 = vmatprep.mubr.f32.mxu0 0.0
        %405 = vmatmul.mubr.f32.gmra.mrb[0].mxu0 %v285
        %v406 = vpop.f32.mrb[0].mxu0
        %v407 = vadd.f32 0.0, %v406
        %v408 = vpop.f32.mrb[0].mxu0
        %409 = vmatprep.mubr.f32.mxu0 0.0
        %410 = vmatmul.mubr.f32.gmra.mrb[0].mxu0 %v288
        %v411 = vpop.f32.mrb[0].mxu0
        %v412 = vadd.f32 0.0, %v411
        %v413 = vpop.f32.mrb[0].mxu0
        %414 = vmatprep.mubr.f32.mxu0 0.0
        %415 = vmatmul.mubr.f32.gmra.mrb[0].mxu0 %v291
        %v416 = vpop.f32.mrb[0].mxu0
        %v417 = vadd.f32 0.0, %v416
        %v418 = vpop.f32.mrb[0].mxu0
        %419 = vmatprep.mubr.f32.mxu0 0.0
        %420 = vmatmul.mubr.f32.gmra.mrb[0].mxu0 %v294
        %v421 = vpop.f32.mrb[0].mxu0
        %v422 = vadd.f32 0.0, %v421
        %v423 = vpop.f32.mrb[0].mxu0
        %424 = vmatprep.mubr.f32.mxu0 0.0
        %425 = vmatmul.mubr.f32.gmra.mrb[0].mxu0 %v297
        %v426 = vpop.f32.mrb[0].mxu0
        %v427 = vadd.f32 0.0, %v426
        %v428 = vpop.f32.mrb[0].mxu0
        %429 = vmatprep.mubr.f32.mxu0 0.0
        %430 = vmatmul.mubr.f32.gmra.mrb[0].mxu0 %v300
        %v431 = vpop.f32.mrb[0].mxu0
        %v432 = vadd.f32 0.0, %v431
        %v433 = vpop.f32.mrb[0].mxu0
        %434 = vmatprep.mubr.f32.mxu0 0.0
        %435 = vmatmul.mubr.f32.gmra.mrb[0].mxu0 %v303
        %v436 = vpop.f32.mrb[0].mxu0
        %v437 = vadd.f32 0.0, %v436
        %v438 = vpop.f32.mrb[0].mxu0
        %439 = vmatprep.mubr.f32.mxu0 0.0
        %440 = vmatmul.mubr.f32.gmra.mrb[0].mxu0 %v306
        %v441 = vpop.f32.mrb[0].mxu0
        %v442 = vadd.f32 0.0, %v441
        %v443 = vpop.f32.mrb[0].mxu0
        %444 = vmatprep.mubr.f32.mxu0 0.0
        %445 = vmatmul.mubr.f32.gmra.mrb[0].mxu0 %v309
        %v446 = vpop.f32.mrb[0].mxu0
        %v447 = vadd.f32 0.0, %v446
        %v448 = vpop.f32.mrb[0].mxu0
        %449 = vmatprep.mubr.f32.mxu0 0.0
        %450 = vmatmul.mubr.f32.gmra.mrb[0].mxu0 %v312
        %v451 = vpop.f32.mrb[0].mxu0
        %v452 = vadd.f32 0.0, %v451
        %v453 = vpop.f32.mrb[0].mxu0
        %454 = vmatprep.mubr.f32.mxu0 0.0
        %455 = vmatmul.mubr.f32.gmra.mrb[0].mxu0 %v315
        %v456 = vpop.f32.mrb[0].mxu0
        %v457 = vadd.f32 0.0, %v456
        %v458 = vpop.f32.mrb[0].mxu0
        %459 = vmatprep.mubr.f32.mxu0 0.0
        %460 = vmatmul.mubr.f32.gmra.mrb[0].mxu0 %v318
        %v461 = vpop.f32.mrb[0].mxu0
        %v462 = vadd.f32 0.0, %v461
        %v463 = vpop.f32.mrb[0].mxu0
        %464 = vdwg.mxu0
        %481 = vrot.lane.b32.xlu0 %v387, 124
        %v482 = vpop.permute.xlu0 %481
        %483 = vrot.lane.b32.xlu0 %v392, 124
        %v484 = vpop.permute.xlu0 %483
        %485 = vrot.lane.b32.xlu0 %v397, 124
        %v486 = vpop.permute.xlu0 %485
        %487 = vrot.lane.b32.xlu0 %v402, 124
        %v488 = vpop.permute.xlu0 %487
        %489 = vrot.lane.b32.xlu0 %v407, 124
        %v490 = vpop.permute.xlu0 %489
        %491 = vrot.lane.b32.xlu0 %v412, 124
        %v492 = vpop.permute.xlu0 %491
        %493 = vrot.lane.b32.xlu0 %v417, 124
        %v494 = vpop.permute.xlu0 %493
        %495 = vrot.lane.b32.xlu0 %v422, 124
        %v496 = vpop.permute.xlu0 %495
        %497 = vrot.lane.b32.xlu0 %v427, 124
        %v498 = vpop.permute.xlu0 %497
        %499 = vrot.lane.b32.xlu0 %v432, 124
        %v500 = vpop.permute.xlu0 %499
        %501 = vrot.lane.b32.xlu0 %v437, 124
        %v502 = vpop.permute.xlu0 %501
        %503 = vrot.lane.b32.xlu0 %v442, 124
        %v504 = vpop.permute.xlu0 %503
        %505 = vrot.lane.b32.xlu0 %v447, 124
        %v506 = vpop.permute.xlu0 %505
        %507 = vrot.lane.b32.xlu0 %v452, 124
        %v508 = vpop.permute.xlu0 %507
        %509 = vrot.lane.b32.xlu0 %v457, 124
        %v510 = vpop.permute.xlu0 %509
        %511 = vrot.lane.b32.xlu0 %v462, 124
        %v512 = vpop.permute.xlu0 %511
        %vm529 = vcmask 31744
        %530 = vst.msk [vmem:[%s243] sm:$0xff] %vm529, %v482
        %531 = vst.msk [vmem:[%s243 + $0x8] sm:$0xff] %vm529, %v484
        %532 = vst.msk [vmem:[%s243 + $0x10] sm:$0xff] %vm529, %v486
        %533 = vst.msk [vmem:[%s243 + $0x18] sm:$0xff] %vm529, %v488
        %534 = vst.msk [vmem:[%s243 + $0x20] sm:$0xff] %vm529, %v490
        %535 = vst.msk [vmem:[%s243 + $0x28] sm:$0xff] %vm529, %v492
        %536 = vst.msk [vmem:[%s243 + $0x30] sm:$0xff] %vm529, %v494
        %537 = vst.msk [vmem:[%s243 + $0x38] sm:$0xff] %vm529, %v496
        %538 = vst.msk [vmem:[%s243 + $0x40] sm:$0xff] %vm529, %v498
        %539 = vst.msk [vmem:[%s243 + $0x48] sm:$0xff] %vm529, %v500
        %540 = vst.msk [vmem:[%s243 + $0x50] sm:$0xff] %vm529, %v502
        %541 = vst.msk [vmem:[%s243 + $0x58] sm:$0xff] %vm529, %v504
        %542 = vst.msk [vmem:[%s243 + $0x60] sm:$0xff] %vm529, %v506
        %543 = vst.msk [vmem:[%s243 + $0x68] sm:$0xff] %vm529, %v508
        %544 = vst.msk [vmem:[%s243 + $0x70] sm:$0xff] %vm529, %v510
        %545 = vst.msk [vmem:[%s243 + $0x78] sm:$0xff] %vm529, %v512
        %546 = vxpose.xlu0.b32.start [1/16] %v387, 128
        %547 = vxpose.xlu0.b32.cont [2/16] %v392, 128
        %548 = vxpose.xlu0.b32.cont [3/16] %v397, 128
        %549 = vxpose.xlu0.b32.cont [4/16] %v402, 128
        %550 = vxpose.xlu0.b32.cont [5/16] %v407, 128
        %551 = vxpose.xlu0.b32.cont [6/16] %v412, 128
        %552 = vxpose.xlu0.b32.cont [7/16] %v417, 128
        %553 = vxpose.xlu0.b32.cont [8/16] %v422, 128
        %554 = vxpose.xlu0.b32.cont [9/16] %v427, 128
        %555 = vxpose.xlu0.b32.cont [10/16] %v432, 128
        %556 = vxpose.xlu0.b32.cont [11/16] %v437, 128
        %557 = vxpose.xlu0.b32.cont [12/16] %v442, 128
        %558 = vxpose.xlu0.b32.cont [13/16] %v447, 128
        %559 = vxpose.xlu0.b32.cont [14/16] %v452, 128
        %560 = vxpose.xlu0.b32.cont [15/16] %v457, 128
        %561 = vxpose.xlu0.b32.end [16/16] %v462, 128
        %v562 = vpop.trf.xlu0
        %v563 = vpop.trf.xlu0
        %v564 = vpop.trf.xlu0
        %v565 = vpop.trf.xlu0
        %v566 = vpop.trf.xlu0
        %v567 = vpop.trf.xlu0
        %v568 = vpop.trf.xlu0
        %v569 = vpop.trf.xlu0
        %v570 = vpop.trf.xlu0
        %v571 = vpop.trf.xlu0
        %v572 = vpop.trf.xlu0
        %v573 = vpop.trf.xlu0
        %v574 = vpop.trf.xlu0
        %v575 = vpop.trf.xlu0
        %v576 = vpop.trf.xlu0
        %v577 = vpop.trf.xlu0
        %578 = vst [vmem:[%s226] sm:$0xf] %v562
        %v579 = vpack.c.bf16 %v248, %v247
        %v580 = vpack.c.bf16 %v250, %v249
        %v581 = vpack.c.bf16 %v252, %v251
        %v582 = vpack.c.bf16 %v254, %v253
        %v583 = vpack.c.bf16 %v256, %v255
        %v584 = vpack.c.bf16 %v258, %v257
        %v585 = vpack.c.bf16 %v260, %v259
        %v586 = vpack.c.bf16 %v262, %v261
        %v587 = vld [vmem:[%s2] sm:$0xf]
        %v588 = vld [vmem:[%s2 + $0x4] sm:$0xf]
        %v589 = vld [vmem:[%s2 + $0x8] sm:$0xf]
        %v590 = vld [vmem:[%s2 + $0xc] sm:$0xf]
        %v591 = vld [vmem:[%s2 + $0x10] sm:$0xf]
        %v592 = vld [vmem:[%s2 + $0x14] sm:$0xf]
        %v593 = vld [vmem:[%s2 + $0x18] sm:$0xf]
        %v594 = vld [vmem:[%s2 + $0x1c] sm:$0xf]
        %v603 = vunpack.c.l.b16 %v587
        %v604 = vunpack.c.l.b16 %v588
        %v605 = vunpack.c.l.b16 %v589
        %v606 = vunpack.c.l.b16 %v590
        %v607 = vunpack.c.l.b16 %v591
        %v608 = vunpack.c.l.b16 %v592
        %v609 = vunpack.c.l.b16 %v593
        %v610 = vunpack.c.l.b16 %v594
        %v611 = vpack.c.b16 %v604, %v603
        %v612 = vpack.c.b16 %v606, %v605
        %v613 = vpack.c.b16 %v608, %v607
        %v614 = vpack.c.b16 %v610, %v609
        %v620 = vsel %vm271, %v579, 0
        %v623 = vsel %vm271, %v580, 0
        %v626 = vsel %vm271, %v581, 0
        %v629 = vsel %vm271, %v582, 0
        %v632 = vsel %vm271, %v583, 0
        %v635 = vsel %vm271, %v584, 0
        %v638 = vsel %vm271, %v585, 0
        %v641 = vsel %vm271, %v586, 0
        %643 = vmatprep.subr.bf16.mxu0 0
        %644 = vmatpush1.bf16.msra.mxu0 %v611
        %645 = vmatprep.subr.bf16.mxu0 0
        %646 = vmatpush1.bf16.msra.mxu0 %v612
        %647 = vmatprep.subr.bf16.mxu0 0
        %648 = vmatpush1.bf16.msra.mxu0 %v613
        %649 = vmatprep.subr.bf16.mxu0 0
        %650 = vmatpush1.bf16.msra.mxu0 %v614
        %651 = vmatprep.subr.bf16.mxu0 0
        %652 = vmatpush1.bf16.msra.mxu0 0
        %653 = vmatprep.subr.bf16.mxu0 0
        %654 = vmatpush1.bf16.msra.mxu0 0
        %655 = vmatprep.subr.bf16.mxu0 0
        %656 = vmatpush1.bf16.msra.mxu0 0
        %657 = vmatprep.subr.bf16.mxu0 0
        %658 = vmatpush1.bf16.msra.mxu0 0
        %659 = vmatprep.subr.bf16.mxu0 0
        %660 = vmatpush1.bf16.msra.mxu0 0
        %661 = vmatprep.subr.bf16.mxu0 0
        %662 = vmatpush1.bf16.msra.mxu0 0
        %663 = vmatprep.subr.bf16.mxu0 0
        %664 = vmatpush1.bf16.msra.mxu0 0
        %665 = vmatprep.subr.bf16.mxu0 0
        %666 = vmatpush1.bf16.msra.mxu0 0
        %667 = vmatprep.subr.bf16.mxu0 0
        %668 = vmatpush1.bf16.msra.mxu0 0
        %669 = vmatprep.subr.bf16.mxu0 0
        %670 = vmatpush1.bf16.msra.mxu0 0
        %671 = vmatprep.subr.bf16.mxu0 0
        %672 = vmatpush1.bf16.msra.mxu0 0
        %673 = vmatprep.subr.bf16.mxu0 0
        %674 = vmatpush1.bf16.msra.mxu0 0
        %675 = vmatprep.mubr.bf16.mxu0 0
        %676 = vmatmul.mubr.bf16.gmra.mrb[0].mxu0 %v620
        %v677 = vpop.f32.mrb[0].mxu0
        %v678 = vadd.f32 0.0, %v677
        %v679 = vpop.f32.mrb[0].mxu0
        %v680 = vpop.f32.mrb[0].mxu0
        %v681 = vadd.f32 0.0, %v680
        %v682 = vpop.f32.mrb[0].mxu0
        %683 = vmatprep.mubr.bf16.mxu0 0
        %684 = vmatmul.mubr.bf16.gmra.mrb[0].mxu0 %v623
        %v685 = vpop.f32.mrb[0].mxu0
        %v686 = vadd.f32 0.0, %v685
        %v687 = vpop.f32.mrb[0].mxu0
        %v688 = vpop.f32.mrb[0].mxu0
        %v689 = vadd.f32 0.0, %v688
        %v690 = vpop.f32.mrb[0].mxu0
        %691 = vmatprep.mubr.bf16.mxu0 0
        %692 = vmatmul.mubr.bf16.gmra.mrb[0].mxu0 %v626
        %v693 = vpop.f32.mrb[0].mxu0
        %v694 = vadd.f32 0.0, %v693
        %v695 = vpop.f32.mrb[0].mxu0
        %v696 = vpop.f32.mrb[0].mxu0
        %v697 = vadd.f32 0.0, %v696
        %v698 = vpop.f32.mrb[0].mxu0
        %699 = vmatprep.mubr.bf16.mxu0 0
        %700 = vmatmul.mubr.bf16.gmra.mrb[0].mxu0 %v629
        %v701 = vpop.f32.mrb[0].mxu0
        %v702 = vadd.f32 0.0, %v701
        %v703 = vpop.f32.mrb[0].mxu0
        %v704 = vpop.f32.mrb[0].mxu0
        %v705 = vadd.f32 0.0, %v704
        %v706 = vpop.f32.mrb[0].mxu0
        %707 = vmatprep.mubr.bf16.mxu0 0
        %708 = vmatmul.mubr.bf16.gmra.mrb[0].mxu0 %v632
        %v709 = vpop.f32.mrb[0].mxu0
        %v710 = vadd.f32 0.0, %v709
        %v711 = vpop.f32.mrb[0].mxu0
        %v712 = vpop.f32.mrb[0].mxu0
        %v713 = vadd.f32 0.0, %v712
        %v714 = vpop.f32.mrb[0].mxu0
        %715 = vmatprep.mubr.bf16.mxu0 0
        %716 = vmatmul.mubr.bf16.gmra.mrb[0].mxu0 %v635
        %v717 = vpop.f32.mrb[0].mxu0
        %v718 = vadd.f32 0.0, %v717
        %v719 = vpop.f32.mrb[0].mxu0
        %v720 = vpop.f32.mrb[0].mxu0
        %v721 = vadd.f32 0.0, %v720
        %v722 = vpop.f32.mrb[0].mxu0
        %723 = vmatprep.mubr.bf16.mxu0 0
        %724 = vmatmul.mubr.bf16.gmra.mrb[0].mxu0 %v638
        %v725 = vpop.f32.mrb[0].mxu0
        %v726 = vadd.f32 0.0, %v725
        %v727 = vpop.f32.mrb[0].mxu0
        %v728 = vpop.f32.mrb[0].mxu0
        %v729 = vadd.f32 0.0, %v728
        %v730 = vpop.f32.mrb[0].mxu0
        %731 = vmatprep.mubr.bf16.mxu0 0
        %732 = vmatmul.mubr.bf16.gmra.mrb[0].mxu0 %v641
        %v733 = vpop.f32.mrb[0].mxu0
        %v734 = vadd.f32 0.0, %v733
        %v735 = vpop.f32.mrb[0].mxu0
        %v736 = vpop.f32.mrb[0].mxu0
        %v737 = vadd.f32 0.0, %v736
        %v738 = vpop.f32.mrb[0].mxu0
        %739 = vdwg.mxu0
        %v740 = vpack.c.bf16 %v681, %v678
        %v741 = vpack.c.bf16 %v689, %v686
        %v742 = vpack.c.bf16 %v697, %v694
        %v743 = vpack.c.bf16 %v705, %v702
        %v744 = vpack.c.bf16 %v713, %v710
        %v745 = vpack.c.bf16 %v721, %v718
        %v746 = vpack.c.bf16 %v729, %v726
        %v747 = vpack.c.bf16 %v737, %v734
        %v756 = vunpack.c.l.b16 %v740
        %v757 = vunpack.c.h.b16 %v740
        %v758 = vunpack.c.l.b16 %v741
        %v759 = vunpack.c.h.b16 %v741
        %v760 = vunpack.c.l.b16 %v742
        %v761 = vunpack.c.h.b16 %v742
        %v762 = vunpack.c.l.b16 %v743
        %v763 = vunpack.c.h.b16 %v743
        %v764 = vunpack.c.l.b16 %v744
        %v765 = vunpack.c.h.b16 %v744
        %v766 = vunpack.c.l.b16 %v745
        %v767 = vunpack.c.h.b16 %v745
        %v768 = vunpack.c.l.b16 %v746
        %v769 = vunpack.c.h.b16 %v746
        %v770 = vunpack.c.l.b16 %v747
        %v771 = vunpack.c.h.b16 %v747
        %v772 = vpack.c.b16 %v756, %v756
        %v773 = vpack.c.b16 %v757, %v757
        %v774 = vpack.c.b16 %v758, %v758
        %v775 = vpack.c.b16 %v759, %v759
        %v776 = vpack.c.b16 %v760, %v760
        %v777 = vpack.c.b16 %v761, %v761
        %v778 = vpack.c.b16 %v762, %v762
        %v779 = vpack.c.b16 %v763, %v763
        %v780 = vpack.c.b16 %v764, %v764
        %v781 = vpack.c.b16 %v765, %v765
        %v782 = vpack.c.b16 %v766, %v766
        %v783 = vpack.c.b16 %v767, %v767
        %v784 = vpack.c.b16 %v768, %v768
        %v785 = vpack.c.b16 %v769, %v769
        %v786 = vpack.c.b16 %v770, %v770
        %v787 = vpack.c.b16 %v771, %v771
        %vm804 = vcmask 519168
        %805 = vst.msk [vmem:[%s232] sm:$0xf] %vm804, %v772
        %806 = vst.msk [vmem:[%s232 + $0x4] sm:$0xf] %vm804, %v773
        %807 = vst.msk [vmem:[%s232 + $0x8] sm:$0xf] %vm804, %v774
        %808 = vst.msk [vmem:[%s232 + $0xc] sm:$0xf] %vm804, %v775
        %809 = vst.msk [vmem:[%s232 + $0x10] sm:$0xf] %vm804, %v776
        %810 = vst.msk [vmem:[%s232 + $0x14] sm:$0xf] %vm804, %v777
        %811 = vst.msk [vmem:[%s232 + $0x18] sm:$0xf] %vm804, %v778
        %812 = vst.msk [vmem:[%s232 + $0x1c] sm:$0xf] %vm804, %v779
        %813 = vst.msk [vmem:[%s232 + $0x20] sm:$0xf] %vm804, %v780
        %814 = vst.msk [vmem:[%s232 + $0x24] sm:$0xf] %vm804, %v781
        %815 = vst.msk [vmem:[%s232 + $0x28] sm:$0xf] %vm804, %v782
        %816 = vst.msk [vmem:[%s232 + $0x2c] sm:$0xf] %vm804, %v783
        %817 = vst.msk [vmem:[%s232 + $0x30] sm:$0xf] %vm804, %v784
        %818 = vst.msk [vmem:[%s232 + $0x34] sm:$0xf] %vm804, %v785
        %819 = vst.msk [vmem:[%s232 + $0x38] sm:$0xf] %vm804, %v786
        %820 = vst.msk [vmem:[%s232 + $0x3c] sm:$0xf] %vm804, %v787
        %s821 = scalar_lea.vmem %s2, 32
        %v822 = vld [vmem:[%s821] sm:$0xf]
        %v823 = vld [vmem:[%s821 + $0x4] sm:$0xf]
        %v824 = vld [vmem:[%s821 + $0x8] sm:$0xf]
        %v825 = vld [vmem:[%s821 + $0xc] sm:$0xf]
        %v826 = vld [vmem:[%s821 + $0x10] sm:$0xf]
        %v827 = vld [vmem:[%s821 + $0x14] sm:$0xf]
        %v828 = vld [vmem:[%s821 + $0x18] sm:$0xf]
        %v829 = vld [vmem:[%s821 + $0x1c] sm:$0xf]
        %v838 = vunpack.c.l.b16 %v822
        %v839 = vunpack.c.l.b16 %v823
        %v840 = vunpack.c.l.b16 %v824
        %v841 = vunpack.c.l.b16 %v825
        %v842 = vunpack.c.l.b16 %v826
        %v843 = vunpack.c.l.b16 %v827
        %v844 = vunpack.c.l.b16 %v828
        %v845 = vunpack.c.l.b16 %v829
        %v846 = vpack.c.b16 %v839, %v838
        %v847 = vpack.c.b16 %v841, %v840
        %v848 = vpack.c.b16 %v843, %v842
        %v849 = vpack.c.b16 %v845, %v844
        %854 = vmatprep.subr.bf16.mxu0 0
        %855 = vmatpush1.bf16.msra.mxu0 %v846
        %856 = vmatprep.subr.bf16.mxu0 0
        %857 = vmatpush1.bf16.msra.mxu0 %v847
        %858 = vmatprep.subr.bf16.mxu0 0
        %859 = vmatpush1.bf16.msra.mxu0 %v848
        %860 = vmatprep.subr.bf16.mxu0 0
        %861 = vmatpush1.bf16.msra.mxu0 %v849
        %862 = vmatprep.subr.bf16.mxu0 0
        %863 = vmatpush1.bf16.msra.mxu0 0
        %864 = vmatprep.subr.bf16.mxu0 0
        %865 = vmatpush1.bf16.msra.mxu0 0
        %866 = vmatprep.subr.bf16.mxu0 0
        %867 = vmatpush1.bf16.msra.mxu0 0
        %868 = vmatprep.subr.bf16.mxu0 0
        %869 = vmatpush1.bf16.msra.mxu0 0
        %870 = vmatprep.subr.bf16.mxu0 0
        %871 = vmatpush1.bf16.msra.mxu0 0
        %872 = vmatprep.subr.bf16.mxu0 0
        %873 = vmatpush1.bf16.msra.mxu0 0
        %874 = vmatprep.subr.bf16.mxu0 0
        %875 = vmatpush1.bf16.msra.mxu0 0
        %876 = vmatprep.subr.bf16.mxu0 0
        %877 = vmatpush1.bf16.msra.mxu0 0
        %878 = vmatprep.subr.bf16.mxu0 0
        %879 = vmatpush1.bf16.msra.mxu0 0
        %880 = vmatprep.subr.bf16.mxu0 0
        %881 = vmatpush1.bf16.msra.mxu0 0
        %882 = vmatprep.subr.bf16.mxu0 0
        %883 = vmatpush1.bf16.msra.mxu0 0
        %884 = vmatprep.subr.bf16.mxu0 0
        %885 = vmatpush1.bf16.msra.mxu0 0
        %886 = vmatprep.mubr.bf16.mxu0 0
        %887 = vmatmul.mubr.bf16.gmra.mrb[0].mxu0 %v620
        %v888 = vpop.f32.mrb[0].mxu0
        %v889 = vadd.f32 0.0, %v888
        %v890 = vpop.f32.mrb[0].mxu0
        %v891 = vpop.f32.mrb[0].mxu0
        %v892 = vadd.f32 0.0, %v891
        %v893 = vpop.f32.mrb[0].mxu0
        %894 = vmatprep.mubr.bf16.mxu0 0
        %895 = vmatmul.mubr.bf16.gmra.mrb[0].mxu0 %v623
        %v896 = vpop.f32.mrb[0].mxu0
        %v897 = vadd.f32 0.0, %v896
        %v898 = vpop.f32.mrb[0].mxu0
        %v899 = vpop.f32.mrb[0].mxu0
        %v900 = vadd.f32 0.0, %v899
        %v901 = vpop.f32.mrb[0].mxu0
        %902 = vmatprep.mubr.bf16.mxu0 0
        %903 = vmatmul.mubr.bf16.gmra.mrb[0].mxu0 %v626
        %v904 = vpop.f32.mrb[0].mxu0
        %v905 = vadd.f32 0.0, %v904
        %v906 = vpop.f32.mrb[0].mxu0
        %v907 = vpop.f32.mrb[0].mxu0
        %v908 = vadd.f32 0.0, %v907
        %v909 = vpop.f32.mrb[0].mxu0
        %910 = vmatprep.mubr.bf16.mxu0 0
        %911 = vmatmul.mubr.bf16.gmra.mrb[0].mxu0 %v629
        %v912 = vpop.f32.mrb[0].mxu0
        %v913 = vadd.f32 0.0, %v912
        %v914 = vpop.f32.mrb[0].mxu0
        %v915 = vpop.f32.mrb[0].mxu0
        %v916 = vadd.f32 0.0, %v915
        %v917 = vpop.f32.mrb[0].mxu0
        %918 = vmatprep.mubr.bf16.mxu0 0
        %919 = vmatmul.mubr.bf16.gmra.mrb[0].mxu0 %v632
        %v920 = vpop.f32.mrb[0].mxu0
        %v921 = vadd.f32 0.0, %v920
        %v922 = vpop.f32.mrb[0].mxu0
        %v923 = vpop.f32.mrb[0].mxu0
        %v924 = vadd.f32 0.0, %v923
        %v925 = vpop.f32.mrb[0].mxu0
        %926 = vmatprep.mubr.bf16.mxu0 0
        %927 = vmatmul.mubr.bf16.gmra.mrb[0].mxu0 %v635
        %v928 = vpop.f32.mrb[0].mxu0
        %v929 = vadd.f32 0.0, %v928
        %v930 = vpop.f32.mrb[0].mxu0
        %v931 = vpop.f32.mrb[0].mxu0
        %v932 = vadd.f32 0.0, %v931
        %v933 = vpop.f32.mrb[0].mxu0
        %934 = vmatprep.mubr.bf16.mxu0 0
        %935 = vmatmul.mubr.bf16.gmra.mrb[0].mxu0 %v638
        %v936 = vpop.f32.mrb[0].mxu0
        %v937 = vadd.f32 0.0, %v936
        %v938 = vpop.f32.mrb[0].mxu0
        %v939 = vpop.f32.mrb[0].mxu0
        %v940 = vadd.f32 0.0, %v939
        %v941 = vpop.f32.mrb[0].mxu0
        %942 = vmatprep.mubr.bf16.mxu0 0
        %943 = vmatmul.mubr.bf16.gmra.mrb[0].mxu0 %v641
        %v944 = vpop.f32.mrb[0].mxu0
        %v945 = vadd.f32 0.0, %v944
        %v946 = vpop.f32.mrb[0].mxu0
        %v947 = vpop.f32.mrb[0].mxu0
        %v948 = vadd.f32 0.0, %v947
        %v949 = vpop.f32.mrb[0].mxu0
        %950 = vdwg.mxu0
        %v951 = vpack.c.bf16 %v892, %v889
        %v952 = vpack.c.bf16 %v900, %v897
        %v953 = vpack.c.bf16 %v908, %v905
        %v954 = vpack.c.bf16 %v916, %v913
        %v955 = vpack.c.bf16 %v924, %v921
        %v956 = vpack.c.bf16 %v932, %v929
        %v957 = vpack.c.bf16 %v940, %v937
        %v958 = vpack.c.bf16 %v948, %v945
        %v967 = vunpack.c.l.b16 %v951
        %v968 = vunpack.c.h.b16 %v951
        %v969 = vunpack.c.l.b16 %v952
        %v970 = vunpack.c.h.b16 %v952
        %v971 = vunpack.c.l.b16 %v953
        %v972 = vunpack.c.h.b16 %v953
        %v973 = vunpack.c.l.b16 %v954
        %v974 = vunpack.c.h.b16 %v954
        %v975 = vunpack.c.l.b16 %v955
        %v976 = vunpack.c.h.b16 %v955
        %v977 = vunpack.c.l.b16 %v956
        %v978 = vunpack.c.h.b16 %v956
        %v979 = vunpack.c.l.b16 %v957
        %v980 = vunpack.c.h.b16 %v957
        %v981 = vunpack.c.l.b16 %v958
        %v982 = vunpack.c.h.b16 %v958
        %v983 = vpack.c.b16 %v967, %v967
        %v984 = vpack.c.b16 %v968, %v968
        %v985 = vpack.c.b16 %v969, %v969
        %v986 = vpack.c.b16 %v970, %v970
        %v987 = vpack.c.b16 %v971, %v971
        %v988 = vpack.c.b16 %v972, %v972
        %v989 = vpack.c.b16 %v973, %v973
        %v990 = vpack.c.b16 %v974, %v974
        %v991 = vpack.c.b16 %v975, %v975
        %v992 = vpack.c.b16 %v976, %v976
        %v993 = vpack.c.b16 %v977, %v977
        %v994 = vpack.c.b16 %v978, %v978
        %v995 = vpack.c.b16 %v979, %v979
        %v996 = vpack.c.b16 %v980, %v980
        %v997 = vpack.c.b16 %v981, %v981
        %v998 = vpack.c.b16 %v982, %v982
        %s1015 = scalar_lea.vmem %s232, 64 [#allocation4]
        %1016 = vst.msk [vmem:[%s1015] sm:$0xf] %vm804, %v983
        %1017 = vst.msk [vmem:[%s1015 + $0x4] sm:$0xf] %vm804, %v984
        %1018 = vst.msk [vmem:[%s1015 + $0x8] sm:$0xf] %vm804, %v985
        %1019 = vst.msk [vmem:[%s1015 + $0xc] sm:$0xf] %vm804, %v986
        %1020 = vst.msk [vmem:[%s1015 + $0x10] sm:$0xf] %vm804, %v987
        %1021 = vst.msk [vmem:[%s1015 + $0x14] sm:$0xf] %vm804, %v988
        %1022 = vst.msk [vmem:[%s1015 + $0x18] sm:$0xf] %vm804, %v989
        %1023 = vst.msk [vmem:[%s1015 + $0x1c] sm:$0xf] %vm804, %v990
        %1024 = vst.msk [vmem:[%s1015 + $0x20] sm:$0xf] %vm804, %v991
        %1025 = vst.msk [vmem:[%s1015 + $0x24] sm:$0xf] %vm804, %v992
        %1026 = vst.msk [vmem:[%s1015 + $0x28] sm:$0xf] %vm804, %v993
        %1027 = vst.msk [vmem:[%s1015 + $0x2c] sm:$0xf] %vm804, %v994
        %1028 = vst.msk [vmem:[%s1015 + $0x30] sm:$0xf] %vm804, %v995
        %1029 = vst.msk [vmem:[%s1015 + $0x34] sm:$0xf] %vm804, %v996
        %1030 = vst.msk [vmem:[%s1015 + $0x38] sm:$0xf] %vm804, %v997
        %1031 = vst.msk [vmem:[%s1015 + $0x3c] sm:$0xf] %vm804, %v998
        %s1032 = scalar_lea.vmem %s2, 64
        %v1033 = vld [vmem:[%s1032] sm:$0xf]
        %v1034 = vld [vmem:[%s1032 + $0x4] sm:$0xf]
        %v1035 = vld [vmem:[%s1032 + $0x8] sm:$0xf]
        %v1036 = vld [vmem:[%s1032 + $0xc] sm:$0xf]
        %v1037 = vld [vmem:[%s1032 + $0x10] sm:$0xf]
        %v1038 = vld [vmem:[%s1032 + $0x14] sm:$0xf]
        %v1039 = vld [vmem:[%s1032 + $0x18] sm:$0xf]
        %v1040 = vld [vmem:[%s1032 + $0x1c] sm:$0xf]
        %v1049 = vunpack.c.l.b16 %v1033
        %v1050 = vunpack.c.l.b16 %v1034
        %v1051 = vunpack.c.l.b16 %v1035
        %v1052 = vunpack.c.l.b16 %v1036
        %v1053 = vunpack.c.l.b16 %v1037
        %v1054 = vunpack.c.l.b16 %v1038
        %v1055 = vunpack.c.l.b16 %v1039
        %v1056 = vunpack.c.l.b16 %v1040
        %v1057 = vpack.c.b16 %v1050, %v1049
        %v1058 = vpack.c.b16 %v1052, %v1051
        %v1059 = vpack.c.b16 %v1054, %v1053
        %v1060 = vpack.c.b16 %v1056, %v1055
        %1065 = vmatprep.subr.bf16.mxu0 0
        %1066 = vmatpush1.bf16.msra.mxu0 %v1057
        %1067 = vmatprep.subr.bf16.mxu0 0
        %1068 = vmatpush1.bf16.msra.mxu0 %v1058
        %1069 = vmatprep.subr.bf16.mxu0 0
        %1070 = vmatpush1.bf16.msra.mxu0 %v1059
        %1071 = vmatprep.subr.bf16.mxu0 0
        %1072 = vmatpush1.bf16.msra.mxu0 %v1060
        %1073 = vmatprep.subr.bf16.mxu0 0
        %1074 = vmatpush1.bf16.msra.mxu0 0
        %1075 = vmatprep.subr.bf16.mxu0 0
        %1076 = vmatpush1.bf16.msra.mxu0 0
        %1077 = vmatprep.subr.bf16.mxu0 0
        %1078 = vmatpush1.bf16.msra.mxu0 0
        %1079 = vmatprep.subr.bf16.mxu0 0
        %1080 = vmatpush1.bf16.msra.mxu0 0
        %1081 = vmatprep.subr.bf16.mxu0 0
        %1082 = vmatpush1.bf16.msra.mxu0 0
        %1083 = vmatprep.subr.bf16.mxu0 0
        %1084 = vmatpush1.bf16.msra.mxu0 0
        %1085 = vmatprep.subr.bf16.mxu0 0
        %1086 = vmatpush1.bf16.msra.mxu0 0
        %1087 = vmatprep.subr.bf16.mxu0 0
        %1088 = vmatpush1.bf16.msra.mxu0 0
        %1089 = vmatprep.subr.bf16.mxu0 0
        %1090 = vmatpush1.bf16.msra.mxu0 0
        %1091 = vmatprep.subr.bf16.mxu0 0
        %1092 = vmatpush1.bf16.msra.mxu0 0
        %1093 = vmatprep.subr.bf16.mxu0 0
        %1094 = vmatpush1.bf16.msra.mxu0 0
        %1095 = vmatprep.subr.bf16.mxu0 0
        %1096 = vmatpush1.bf16.msra.mxu0 0
        %1097 = vmatprep.mubr.bf16.mxu0 0
        %1098 = vmatmul.mubr.bf16.gmra.mrb[0].mxu0 %v620
        %v1099 = vpop.f32.mrb[0].mxu0
        %v1100 = vadd.f32 0.0, %v1099
        %v1101 = vpop.f32.mrb[0].mxu0
        %v1102 = vpop.f32.mrb[0].mxu0
        %v1103 = vadd.f32 0.0, %v1102
        %v1104 = vpop.f32.mrb[0].mxu0
        %1105 = vmatprep.mubr.bf16.mxu0 0
        %1106 = vmatmul.mubr.bf16.gmra.mrb[0].mxu0 %v623
        %v1107 = vpop.f32.mrb[0].mxu0
        %v1108 = vadd.f32 0.0, %v1107
        %v1109 = vpop.f32.mrb[0].mxu0
        %v1110 = vpop.f32.mrb[0].mxu0
        %v1111 = vadd.f32 0.0, %v1110
        %v1112 = vpop.f32.mrb[0].mxu0
        %1113 = vmatprep.mubr.bf16.mxu0 0
        %1114 = vmatmul.mubr.bf16.gmra.mrb[0].mxu0 %v626
        %v1115 = vpop.f32.mrb[0].mxu0
        %v1116 = vadd.f32 0.0, %v1115
        %v1117 = vpop.f32.mrb[0].mxu0
        %v1118 = vpop.f32.mrb[0].mxu0
        %v1119 = vadd.f32 0.0, %v1118
        %v1120 = vpop.f32.mrb[0].mxu0
        %1121 = vmatprep.mubr.bf16.mxu0 0
        %1122 = vmatmul.mubr.bf16.gmra.mrb[0].mxu0 %v629
        %v1123 = vpop.f32.mrb[0].mxu0
        %v1124 = vadd.f32 0.0, %v1123
        %v1125 = vpop.f32.mrb[0].mxu0
        %v1126 = vpop.f32.mrb[0].mxu0
        %v1127 = vadd.f32 0.0, %v1126
        %v1128 = vpop.f32.mrb[0].mxu0
        %1129 = vmatprep.mubr.bf16.mxu0 0
        %1130 = vmatmul.mubr.bf16.gmra.mrb[0].mxu0 %v632
        %v1131 = vpop.f32.mrb[0].mxu0
        %v1132 = vadd.f32 0.0, %v1131
        %v1133 = vpop.f32.mrb[0].mxu0
        %v1134 = vpop.f32.mrb[0].mxu0
        %v1135 = vadd.f32 0.0, %v1134
        %v1136 = vpop.f32.mrb[0].mxu0
        %1137 = vmatprep.mubr.bf16.mxu0 0
        %1138 = vmatmul.mubr.bf16.gmra.mrb[0].mxu0 %v635
        %v1139 = vpop.f32.mrb[0].mxu0
        %v1140 = vadd.f32 0.0, %v1139
        %v1141 = vpop.f32.mrb[0].mxu0
        %v1142 = vpop.f32.mrb[0].mxu0
        %v1143 = vadd.f32 0.0, %v1142
        %v1144 = vpop.f32.mrb[0].mxu0
        %1145 = vmatprep.mubr.bf16.mxu0 0
        %1146 = vmatmul.mubr.bf16.gmra.mrb[0].mxu0 %v638
        %v1147 = vpop.f32.mrb[0].mxu0
        %v1148 = vadd.f32 0.0, %v1147
        %v1149 = vpop.f32.mrb[0].mxu0
        %v1150 = vpop.f32.mrb[0].mxu0
        %v1151 = vadd.f32 0.0, %v1150
        %v1152 = vpop.f32.mrb[0].mxu0
        %1153 = vmatprep.mubr.bf16.mxu0 0
        %1154 = vmatmul.mubr.bf16.gmra.mrb[0].mxu0 %v641
        %v1155 = vpop.f32.mrb[0].mxu0
        %v1156 = vadd.f32 0.0, %v1155
        %v1157 = vpop.f32.mrb[0].mxu0
        %v1158 = vpop.f32.mrb[0].mxu0
        %v1159 = vadd.f32 0.0, %v1158
        %v1160 = vpop.f32.mrb[0].mxu0
        %1161 = vdwg.mxu0
        %v1162 = vpack.c.bf16 %v1103, %v1100
        %v1163 = vpack.c.bf16 %v1111, %v1108
        %v1164 = vpack.c.bf16 %v1119, %v1116
        %v1165 = vpack.c.bf16 %v1127, %v1124
        %v1166 = vpack.c.bf16 %v1135, %v1132
        %v1167 = vpack.c.bf16 %v1143, %v1140
        %v1168 = vpack.c.bf16 %v1151, %v1148
        %v1169 = vpack.c.bf16 %v1159, %v1156
        %v1178 = vunpack.c.l.b16 %v1162
        %v1179 = vunpack.c.h.b16 %v1162
        %v1180 = vunpack.c.l.b16 %v1163
        %v1181 = vunpack.c.h.b16 %v1163
        %v1182 = vunpack.c.l.b16 %v1164
        %v1183 = vunpack.c.h.b16 %v1164
        %v1184 = vunpack.c.l.b16 %v1165
        %v1185 = vunpack.c.h.b16 %v1165
        %v1186 = vunpack.c.l.b16 %v1166
        %v1187 = vunpack.c.h.b16 %v1166
        %v1188 = vunpack.c.l.b16 %v1167
        %v1189 = vunpack.c.h.b16 %v1167
        %v1190 = vunpack.c.l.b16 %v1168
        %v1191 = vunpack.c.h.b16 %v1168
        %v1192 = vunpack.c.l.b16 %v1169
        %v1193 = vunpack.c.h.b16 %v1169
        %v1194 = vpack.c.b16 %v1178, %v1178
        %v1195 = vpack.c.b16 %v1179, %v1179
        %v1196 = vpack.c.b16 %v1180, %v1180
        %v1197 = vpack.c.b16 %v1181, %v1181
        %v1198 = vpack.c.b16 %v1182, %v1182
        %v1199 = vpack.c.b16 %v1183, %v1183
        %v1200 = vpack.c.b16 %v1184, %v1184
        %v1201 = vpack.c.b16 %v1185, %v1185
        %v1202 = vpack.c.b16 %v1186, %v1186
        %v1203 = vpack.c.b16 %v1187, %v1187
        %v1204 = vpack.c.b16 %v1188, %v1188
        %v1205 = vpack.c.b16 %v1189, %v1189
        %v1206 = vpack.c.b16 %v1190, %v1190
        %v1207 = vpack.c.b16 %v1191, %v1191
        %v1208 = vpack.c.b16 %v1192, %v1192
        %v1209 = vpack.c.b16 %v1193, %v1193
        %s1226 = scalar_lea.vmem %s232, 128 [#allocation4]
        %1227 = vst.msk [vmem:[%s1226] sm:$0xf] %vm804, %v1194
        %1228 = vst.msk [vmem:[%s1226 + $0x4] sm:$0xf] %vm804, %v1195
        %1229 = vst.msk [vmem:[%s1226 + $0x8] sm:$0xf] %vm804, %v1196
        %1230 = vst.msk [vmem:[%s1226 + $0xc] sm:$0xf] %vm804, %v1197
        %1231 = vst.msk [vmem:[%s1226 + $0x10] sm:$0xf] %vm804, %v1198
        %1232 = vst.msk [vmem:[%s1226 + $0x14] sm:$0xf] %vm804, %v1199
        %1233 = vst.msk [vmem:[%s1226 + $0x18] sm:$0xf] %vm804, %v1200
        %1234 = vst.msk [vmem:[%s1226 + $0x1c] sm:$0xf] %vm804, %v1201
        %1235 = vst.msk [vmem:[%s1226 + $0x20] sm:$0xf] %vm804, %v1202
        %1236 = vst.msk [vmem:[%s1226 + $0x24] sm:$0xf] %vm804, %v1203
        %1237 = vst.msk [vmem:[%s1226 + $0x28] sm:$0xf] %vm804, %v1204
        %1238 = vst.msk [vmem:[%s1226 + $0x2c] sm:$0xf] %vm804, %v1205
        %1239 = vst.msk [vmem:[%s1226 + $0x30] sm:$0xf] %vm804, %v1206
        %1240 = vst.msk [vmem:[%s1226 + $0x34] sm:$0xf] %vm804, %v1207
        %1241 = vst.msk [vmem:[%s1226 + $0x38] sm:$0xf] %vm804, %v1208
        %1242 = vst.msk [vmem:[%s1226 + $0x3c] sm:$0xf] %vm804, %v1209
        %s1243 = scalar_lea.vmem %s2, 96
        %v1244 = vld [vmem:[%s1243] sm:$0xf]
        %v1245 = vld [vmem:[%s1243 + $0x4] sm:$0xf]
        %v1246 = vld [vmem:[%s1243 + $0x8] sm:$0xf]
        %v1247 = vld [vmem:[%s1243 + $0xc] sm:$0xf]
        %v1248 = vld [vmem:[%s1243 + $0x10] sm:$0xf]
        %v1249 = vld [vmem:[%s1243 + $0x14] sm:$0xf]
        %v1250 = vld [vmem:[%s1243 + $0x18] sm:$0xf]
        %v1251 = vld [vmem:[%s1243 + $0x1c] sm:$0xf]
        %v1260 = vunpack.c.l.b16 %v1244
        %v1261 = vunpack.c.l.b16 %v1245
        %v1262 = vunpack.c.l.b16 %v1246
        %v1263 = vunpack.c.l.b16 %v1247
        %v1264 = vunpack.c.l.b16 %v1248
        %v1265 = vunpack.c.l.b16 %v1249
        %v1266 = vunpack.c.l.b16 %v1250
        %v1267 = vunpack.c.l.b16 %v1251
        %v1268 = vpack.c.b16 %v1261, %v1260
        %v1269 = vpack.c.b16 %v1263, %v1262
        %v1270 = vpack.c.b16 %v1265, %v1264
        %v1271 = vpack.c.b16 %v1267, %v1266
        %1276 = vmatprep.subr.bf16.mxu0 0
        %1277 = vmatpush1.bf16.msra.mxu0 %v1268
        %1278 = vmatprep.subr.bf16.mxu0 0
        %1279 = vmatpush1.bf16.msra.mxu0 %v1269
        %1280 = vmatprep.subr.bf16.mxu0 0
        %1281 = vmatpush1.bf16.msra.mxu0 %v1270
        %1282 = vmatprep.subr.bf16.mxu0 0
        %1283 = vmatpush1.bf16.msra.mxu0 %v1271
        %1284 = vmatprep.subr.bf16.mxu0 0
        %1285 = vmatpush1.bf16.msra.mxu0 0
        %1286 = vmatprep.subr.bf16.mxu0 0
        %1287 = vmatpush1.bf16.msra.mxu0 0
        %1288 = vmatprep.subr.bf16.mxu0 0
        %1289 = vmatpush1.bf16.msra.mxu0 0
        %1290 = vmatprep.subr.bf16.mxu0 0
        %1291 = vmatpush1.bf16.msra.mxu0 0
        %1292 = vmatprep.subr.bf16.mxu0 0
        %1293 = vmatpush1.bf16.msra.mxu0 0
        %1294 = vmatprep.subr.bf16.mxu0 0
        %1295 = vmatpush1.bf16.msra.mxu0 0
        %1296 = vmatprep.subr.bf16.mxu0 0
        %1297 = vmatpush1.bf16.msra.mxu0 0
        %1298 = vmatprep.subr.bf16.mxu0 0
        %1299 = vmatpush1.bf16.msra.mxu0 0
        %1300 = vmatprep.subr.bf16.mxu0 0
        %1301 = vmatpush1.bf16.msra.mxu0 0
        %1302 = vmatprep.subr.bf16.mxu0 0
        %1303 = vmatpush1.bf16.msra.mxu0 0
        %1304 = vmatprep.subr.bf16.mxu0 0
        %1305 = vmatpush1.bf16.msra.mxu0 0
        %1306 = vmatprep.subr.bf16.mxu0 0
        %1307 = vmatpush1.bf16.msra.mxu0 0
        %1308 = vmatprep.mubr.bf16.mxu0 0
        %1309 = vmatmul.mubr.bf16.gmra.mrb[0].mxu0 %v620
        %v1310 = vpop.f32.mrb[0].mxu0
        %v1311 = vadd.f32 0.0, %v1310
        %v1312 = vpop.f32.mrb[0].mxu0
        %v1313 = vpop.f32.mrb[0].mxu0
        %v1314 = vadd.f32 0.0, %v1313
        %v1315 = vpop.f32.mrb[0].mxu0
        %1316 = vmatprep.mubr.bf16.mxu0 0
        %1317 = vmatmul.mubr.bf16.gmra.mrb[0].mxu0 %v623
        %v1318 = vpop.f32.mrb[0].mxu0
        %v1319 = vadd.f32 0.0, %v1318
        %v1320 = vpop.f32.mrb[0].mxu0
        %v1321 = vpop.f32.mrb[0].mxu0
        %v1322 = vadd.f32 0.0, %v1321
        %v1323 = vpop.f32.mrb[0].mxu0
        %1324 = vmatprep.mubr.bf16.mxu0 0
        %1325 = vmatmul.mubr.bf16.gmra.mrb[0].mxu0 %v626
        %v1326 = vpop.f32.mrb[0].mxu0
        %v1327 = vadd.f32 0.0, %v1326
        %v1328 = vpop.f32.mrb[0].mxu0
        %v1329 = vpop.f32.mrb[0].mxu0
        %v1330 = vadd.f32 0.0, %v1329
        %v1331 = vpop.f32.mrb[0].mxu0
        %1332 = vmatprep.mubr.bf16.mxu0 0
        %1333 = vmatmul.mubr.bf16.gmra.mrb[0].mxu0 %v629
        %v1334 = vpop.f32.mrb[0].mxu0
        %v1335 = vadd.f32 0.0, %v1334
        %v1336 = vpop.f32.mrb[0].mxu0
        %v1337 = vpop.f32.mrb[0].mxu0
        %v1338 = vadd.f32 0.0, %v1337
        %v1339 = vpop.f32.mrb[0].mxu0
        %1340 = vmatprep.mubr.bf16.mxu0 0
        %1341 = vmatmul.mubr.bf16.gmra.mrb[0].mxu0 %v632
        %v1342 = vpop.f32.mrb[0].mxu0
        %v1343 = vadd.f32 0.0, %v1342
        %v1344 = vpop.f32.mrb[0].mxu0
        %v1345 = vpop.f32.mrb[0].mxu0
        %v1346 = vadd.f32 0.0, %v1345
        %v1347 = vpop.f32.mrb[0].mxu0
        %1348 = vmatprep.mubr.bf16.mxu0 0
        %1349 = vmatmul.mubr.bf16.gmra.mrb[0].mxu0 %v635
        %v1350 = vpop.f32.mrb[0].mxu0
        %v1351 = vadd.f32 0.0, %v1350
        %v1352 = vpop.f32.mrb[0].mxu0
        %v1353 = vpop.f32.mrb[0].mxu0
        %v1354 = vadd.f32 0.0, %v1353
        %v1355 = vpop.f32.mrb[0].mxu0
        %1356 = vmatprep.mubr.bf16.mxu0 0
        %1357 = vmatmul.mubr.bf16.gmra.mrb[0].mxu0 %v638
        %v1358 = vpop.f32.mrb[0].mxu0
        %v1359 = vadd.f32 0.0, %v1358
        %v1360 = vpop.f32.mrb[0].mxu0
        %v1361 = vpop.f32.mrb[0].mxu0
        %v1362 = vadd.f32 0.0, %v1361
        %v1363 = vpop.f32.mrb[0].mxu0
        %1364 = vmatprep.mubr.bf16.mxu0 0
        %1365 = vmatmul.mubr.bf16.gmra.mrb[0].mxu0 %v641
        %v1366 = vpop.f32.mrb[0].mxu0
        %v1367 = vadd.f32 0.0, %v1366
        %v1368 = vpop.f32.mrb[0].mxu0
        %v1369 = vpop.f32.mrb[0].mxu0
        %v1370 = vadd.f32 0.0, %v1369
        %v1371 = vpop.f32.mrb[0].mxu0
        %1372 = vdwg.mxu0
        %v1373 = vpack.c.bf16 %v1314, %v1311
        %v1374 = vpack.c.bf16 %v1322, %v1319
        %v1375 = vpack.c.bf16 %v1330, %v1327
        %v1376 = vpack.c.bf16 %v1338, %v1335
        %v1377 = vpack.c.bf16 %v1346, %v1343
        %v1378 = vpack.c.bf16 %v1354, %v1351
        %v1379 = vpack.c.bf16 %v1362, %v1359
        %v1380 = vpack.c.bf16 %v1370, %v1367
        %v1389 = vunpack.c.l.b16 %v1373
        %v1390 = vunpack.c.h.b16 %v1373
        %v1391 = vunpack.c.l.b16 %v1374
        %v1392 = vunpack.c.h.b16 %v1374
        %v1393 = vunpack.c.l.b16 %v1375
        %v1394 = vunpack.c.h.b16 %v1375
        %v1395 = vunpack.c.l.b16 %v1376
        %v1396 = vunpack.c.h.b16 %v1376
        %v1397 = vunpack.c.l.b16 %v1377
        %v1398 = vunpack.c.h.b16 %v1377
        %v1399 = vunpack.c.l.b16 %v1378
        %v1400 = vunpack.c.h.b16 %v1378
        %v1401 = vunpack.c.l.b16 %v1379
        %v1402 = vunpack.c.h.b16 %v1379
        %v1403 = vunpack.c.l.b16 %v1380
        %v1404 = vunpack.c.h.b16 %v1380
        %v1405 = vpack.c.b16 %v1389, %v1389
        %v1406 = vpack.c.b16 %v1390, %v1390
        %v1407 = vpack.c.b16 %v1391, %v1391
        %v1408 = vpack.c.b16 %v1392, %v1392
        %v1409 = vpack.c.b16 %v1393, %v1393
        %v1410 = vpack.c.b16 %v1394, %v1394
        %v1411 = vpack.c.b16 %v1395, %v1395
        %v1412 = vpack.c.b16 %v1396, %v1396
        %v1413 = vpack.c.b16 %v1397, %v1397
        %v1414 = vpack.c.b16 %v1398, %v1398
        %v1415 = vpack.c.b16 %v1399, %v1399
        %v1416 = vpack.c.b16 %v1400, %v1400
        %v1417 = vpack.c.b16 %v1401, %v1401
        %v1418 = vpack.c.b16 %v1402, %v1402
        %v1419 = vpack.c.b16 %v1403, %v1403
        %v1420 = vpack.c.b16 %v1404, %v1404
        %s1437 = scalar_lea.vmem %s232, 192 [#allocation4]
        %1438 = vst.msk [vmem:[%s1437] sm:$0xf] %vm804, %v1405
        %1439 = vst.msk [vmem:[%s1437 + $0x4] sm:$0xf] %vm804, %v1406
        %1440 = vst.msk [vmem:[%s1437 + $0x8] sm:$0xf] %vm804, %v1407
        %1441 = vst.msk [vmem:[%s1437 + $0xc] sm:$0xf] %vm804, %v1408
        %1442 = vst.msk [vmem:[%s1437 + $0x10] sm:$0xf] %vm804, %v1409
        %1443 = vst.msk [vmem:[%s1437 + $0x14] sm:$0xf] %vm804, %v1410
        %1444 = vst.msk [vmem:[%s1437 + $0x18] sm:$0xf] %vm804, %v1411
        %1445 = vst.msk [vmem:[%s1437 + $0x1c] sm:$0xf] %vm804, %v1412
        %1446 = vst.msk [vmem:[%s1437 + $0x20] sm:$0xf] %vm804, %v1413
        %1447 = vst.msk [vmem:[%s1437 + $0x24] sm:$0xf] %vm804, %v1414
        %1448 = vst.msk [vmem:[%s1437 + $0x28] sm:$0xf] %vm804, %v1415
        %1449 = vst.msk [vmem:[%s1437 + $0x2c] sm:$0xf] %vm804, %v1416
        %1450 = vst.msk [vmem:[%s1437 + $0x30] sm:$0xf] %vm804, %v1417
        %1451 = vst.msk [vmem:[%s1437 + $0x34] sm:$0xf] %vm804, %v1418
        %1452 = vst.msk [vmem:[%s1437 + $0x38] sm:$0xf] %vm804, %v1419
        %1453 = vst.msk [vmem:[%s1437 + $0x3c] sm:$0xf] %vm804, %v1420
        %s1454 = smul.u32 16, %s20
        %p1455 = scmp.lt.s32.totalorder %s1454, 31
        %s1456 = scalar_select %p1455, %s1454, 31
        %s1457 = smul.addr %s1456, 8
        %s1458 = scalar_lea.vmem %s3, %s1457
        %s1459 = sand.u32 %s122, 1
        %s1460 = scalar_lea.sflag [#allocation3], %s1459
        %s1461 = sand.u32 %s122, 1
        %s1462 = smul.addr %s1461, 4
        %s1463 = scalar_lea.vmem [#allocation2], %s1462
        %s1464 = sand.u32 %s148, 1
        %s1465 = sand.u32 %s148, 1
        %s1466 = smul.addr %s1465, 256
        %s1467 = scalar_lea.vmem [#allocation4], %s1466
        // Predicated region
        $region33: #{tpu_custom_call.1} parent=31 // pred_check
          %p1468 = pneg %p106
        $region34: #{tpu_custom_call.1} parent=31 // pred_check_branch
          %1470 = sbr.rel (%p1468) target = $region36
        $region35: #{tpu_custom_call.1} parent=31 // pred_region
          %s1471 = smul.u32 16, %s20
        $region36: #{tpu_custom_call.1} parent=31 // pred_fallthru
          _
        // Predicated region
        $region37: #{tpu_custom_call.1} parent=31 // pred_check
          %p1472 = pneg %p132
        $region38: #{tpu_custom_call.1} parent=31 // pred_check_branch
          %1474 = sbr.rel (%p1472) target = $region40
        $region39: #{tpu_custom_call.1} parent=31 // pred_region
          %s1476 = ssub.s32 64, 64
          %1477 = vsyncadd %s1460, %s1476
          %s1478 = smul.addr %s20, 64
          %s1479 = scalar_lea.hbm %s4, %s1478
          %s1481 = sshll.u32 %s1463, 4
          %s1482 = int_to_ptr.vmem [resolvable:$true] %s1481
          %1484 = dma.vmem_to_hbm [thread:$0]  %s1482, 64, %s1479, %s1460
        $region40: #{tpu_custom_call.1} parent=31 // pred_fallthru
          _
        // Predicated region
        $region41: #{tpu_custom_call.1} parent=31 // pred_check
          %p1485 = pneg %p158
        $region42: #{tpu_custom_call.1} parent=31 // pred_check_branch
          %1487 = sbr.rel (%p1485) target = $region44
        $region43: #{tpu_custom_call.1} parent=31 // pred_region
          %s1488 = smul.u32 16, %s20
          %s1489 = smul.addr %s1488, 4
          %s1490 = scalar_lea.vmem %s5, %s1489
          // Predicated region
          $region45: #{tpu_custom_call.1} parent=43 // pred_check
            _
          $region46: #{tpu_custom_call.1} parent=43 // pred_check_branch
            %1492 = sbr.rel (0) target = $region48
          $region47: #{tpu_custom_call.1} parent=43 // pred_region
            // Predicated region
            $region49: #{tpu_custom_call.1} parent=47 // pred_check
              _
            $region50: #{tpu_custom_call.1} parent=47 // pred_check_branch
              %1494 = sbr.rel target = $region52
            $region51: #{tpu_custom_call.1} parent=47 // pred_region
              // Predicated region
              $region64: #{tpu_custom_call.1} parent=51 // pred_check
                _
              $region65: #{tpu_custom_call.1} parent=51 // pred_check_branch
                %1635 = sbr.rel (0) target = $region67
              $region66: #{tpu_custom_call.1} parent=51 // pred_region
                loop: start=0, step=1, limit=1
                $region68: #{tpu_custom_call.1} parent=66 // loop_pre_header
                  _
                $region69: #{tpu_custom_call.1} parent=66 // loop_header
                  %s1637 = sphi 0, %s1641
                  %p1638 = scmp.ge.s32.totalorder %s1637, 1
                  %s1642 = sphi %s1467, %s1467
                  %s1643 = sphi %s1490, %s1490
                $region70: #{tpu_custom_call.1} parent=66 // loop_header_branch
                  %1640 = sbr.rel (%p1638) target = $region74
                $region71: #{tpu_custom_call.1} parent=66 // loop_body
                  _
                $region72: #{tpu_custom_call.1} parent=66 // loop_footer
                  %s1641 = sadd.s32 1, %s1637
                $region73: #{tpu_custom_call.1} parent=66 // loop_footer_branch
                  %1636 = sbr.rel target = $region69
                $region74: #{tpu_custom_call.1} parent=66 // loop_exit
                  _
                loop: start=0, step=1, limit=1
                $region75: #{tpu_custom_call.1} parent=66 // loop_pre_header
                  _
                $region76: #{tpu_custom_call.1} parent=66 // loop_header
                  %s1646 = sphi 0, %s1650
                  %p1647 = scmp.ge.s32.totalorder %s1646, 1
                  %s1651 = sphi %s1467, %s1467
                  %s1652 = sphi %s1490, %s1490
                $region77: #{tpu_custom_call.1} parent=66 // loop_header_branch
                  %1649 = sbr.rel (%p1647) target = $region81
                $region78: #{tpu_custom_call.1} parent=66 // loop_body
                  %v1653 = vld [vmem:[%s1651] sm:$0xf]
                  %1654 = vst [vmem:[%s1652] sm:$0xf] %v1653
                  %v1655 = vld [vmem:[%s1651 + $0x4] sm:$0xf]
                  %1656 = vst [vmem:[%s1652 + $0x4] sm:$0xf] %v1655
                  %v1657 = vld [vmem:[%s1651 + $0x8] sm:$0xf]
                  %1658 = vst [vmem:[%s1652 + $0x8] sm:$0xf] %v1657
                  %v1659 = vld [vmem:[%s1651 + $0xc] sm:$0xf]
                  %1660 = vst [vmem:[%s1652 + $0xc] sm:$0xf] %v1659
                  %v1661 = vld [vmem:[%s1651 + $0x10] sm:$0xf]
                  %1662 = vst [vmem:[%s1652 + $0x10] sm:$0xf] %v1661
                  %v1663 = vld [vmem:[%s1651 + $0x14] sm:$0xf]
                  %1664 = vst [vmem:[%s1652 + $0x14] sm:$0xf] %v1663
                  %v1665 = vld [vmem:[%s1651 + $0x18] sm:$0xf]
                  %1666 = vst [vmem:[%s1652 + $0x18] sm:$0xf] %v1665
                  %v1667 = vld [vmem:[%s1651 + $0x1c] sm:$0xf]
                  %1668 = vst [vmem:[%s1652 + $0x1c] sm:$0xf] %v1667
                  %v1669 = vld [vmem:[%s1651 + $0x20] sm:$0xf]
                  %1670 = vst [vmem:[%s1652 + $0x20] sm:$0xf] %v1669
                  %v1671 = vld [vmem:[%s1651 + $0x24] sm:$0xf]
                  %1672 = vst [vmem:[%s1652 + $0x24] sm:$0xf] %v1671
                  %v1673 = vld [vmem:[%s1651 + $0x28] sm:$0xf]
                  %1674 = vst [vmem:[%s1652 + $0x28] sm:$0xf] %v1673
                  %v1675 = vld [vmem:[%s1651 + $0x2c] sm:$0xf]
                  %1676 = vst [vmem:[%s1652 + $0x2c] sm:$0xf] %v1675
                  %v1677 = vld [vmem:[%s1651 + $0x30] sm:$0xf]
                  %1678 = vst [vmem:[%s1652 + $0x30] sm:$0xf] %v1677
                  %v1679 = vld [vmem:[%s1651 + $0x34] sm:$0xf]
                  %1680 = vst [vmem:[%s1652 + $0x34] sm:$0xf] %v1679
                  %v1681 = vld [vmem:[%s1651 + $0x38] sm:$0xf]
                  %1682 = vst [vmem:[%s1652 + $0x38] sm:$0xf] %v1681
                  %v1683 = vld [vmem:[%s1651 + $0x3c] sm:$0xf]
                  %1684 = vst [vmem:[%s1652 + $0x3c] sm:$0xf] %v1683
                  %v1685 = vld [vmem:[%s1651 + $0x40] sm:$0xf]
                  %1686 = vst [vmem:[%s1652 + $0x80] sm:$0xf] %v1685
                  %v1687 = vld [vmem:[%s1651 + $0x44] sm:$0xf]
                  %1688 = vst [vmem:[%s1652 + $0x84] sm:$0xf] %v1687
                  %v1689 = vld [vmem:[%s1651 + $0x48] sm:$0xf]
                  %1690 = vst [vmem:[%s1652 + $0x88] sm:$0xf] %v1689
                  %v1691 = vld [vmem:[%s1651 + $0x4c] sm:$0xf]
                  %1692 = vst [vmem:[%s1652 + $0x8c] sm:$0xf] %v1691
                  %v1693 = vld [vmem:[%s1651 + $0x50] sm:$0xf]
                  %1694 = vst [vmem:[%s1652 + $0x90] sm:$0xf] %v1693
                  %v1695 = vld [vmem:[%s1651 + $0x54] sm:$0xf]
                  %1696 = vst [vmem:[%s1652 + $0x94] sm:$0xf] %v1695
                  %v1697 = vld [vmem:[%s1651 + $0x58] sm:$0xf]
                  %1698 = vst [vmem:[%s1652 + $0x98] sm:$0xf] %v1697
                  %v1699 = vld [vmem:[%s1651 + $0x5c] sm:$0xf]
                  %1700 = vst [vmem:[%s1652 + $0x9c] sm:$0xf] %v1699
                  %v1701 = vld [vmem:[%s1651 + $0x60] sm:$0xf]
                  %1702 = vst [vmem:[%s1652 + $0xa0] sm:$0xf] %v1701
                  %v1703 = vld [vmem:[%s1651 + $0x64] sm:$0xf]
                  %1704 = vst [vmem:[%s1652 + $0xa4] sm:$0xf] %v1703
                  %v1705 = vld [vmem:[%s1651 + $0x68] sm:$0xf]
                  %1706 = vst [vmem:[%s1652 + $0xa8] sm:$0xf] %v1705
                  %v1707 = vld [vmem:[%s1651 + $0x6c] sm:$0xf]
                  %1708 = vst [vmem:[%s1652 + $0xac] sm:$0xf] %v1707
                  %v1709 = vld [vmem:[%s1651 + $0x70] sm:$0xf]
                  %1710 = vst [vmem:[%s1652 + $0xb0] sm:$0xf] %v1709
                  %v1711 = vld [vmem:[%s1651 + $0x74] sm:$0xf]
                  %1712 = vst [vmem:[%s1652 + $0xb4] sm:$0xf] %v1711
                  %v1713 = vld [vmem:[%s1651 + $0x78] sm:$0xf]
                  %1714 = vst [vmem:[%s1652 + $0xb8] sm:$0xf] %v1713
                  %v1715 = vld [vmem:[%s1651 + $0x7c] sm:$0xf]
                  %1716 = vst [vmem:[%s1652 + $0xbc] sm:$0xf] %v1715
                  %v1717 = vld [vmem:[%s1651 + $0x80] sm:$0xf]
                  %1718 = vst [vmem:[%s1652 + $0x100] sm:$0xf] %v1717
                  %v1719 = vld [vmem:[%s1651 + $0x84] sm:$0xf]
                  %1720 = vst [vmem:[%s1652 + $0x104] sm:$0xf] %v1719
                  %v1721 = vld [vmem:[%s1651 + $0x88] sm:$0xf]
                  %1722 = vst [vmem:[%s1652 + $0x108] sm:$0xf] %v1721
                  %v1723 = vld [vmem:[%s1651 + $0x8c] sm:$0xf]
                  %1724 = vst [vmem:[%s1652 + $0x10c] sm:$0xf] %v1723
                  %v1725 = vld [vmem:[%s1651 + $0x90] sm:$0xf]
                  %1726 = vst [vmem:[%s1652 + $0x110] sm:$0xf] %v1725
                  %v1727 = vld [vmem:[%s1651 + $0x94] sm:$0xf]
                  %1728 = vst [vmem:[%s1652 + $0x114] sm:$0xf] %v1727
                  %v1729 = vld [vmem:[%s1651 + $0x98] sm:$0xf]
                  %1730 = vst [vmem:[%s1652 + $0x118] sm:$0xf] %v1729
                  %v1731 = vld [vmem:[%s1651 + $0x9c] sm:$0xf]
                  %1732 = vst [vmem:[%s1652 + $0x11c] sm:$0xf] %v1731
                  %v1733 = vld [vmem:[%s1651 + $0xa0] sm:$0xf]
                  %1734 = vst [vmem:[%s1652 + $0x120] sm:$0xf] %v1733
                  %v1735 = vld [vmem:[%s1651 + $0xa4] sm:$0xf]
                  %1736 = vst [vmem:[%s1652 + $0x124] sm:$0xf] %v1735
                  %v1737 = vld [vmem:[%s1651 + $0xa8] sm:$0xf]
                  %1738 = vst [vmem:[%s1652 + $0x128] sm:$0xf] %v1737
                  %v1739 = vld [vmem:[%s1651 + $0xac] sm:$0xf]
                  %1740 = vst [vmem:[%s1652 + $0x12c] sm:$0xf] %v1739
                  %v1741 = vld [vmem:[%s1651 + $0xb0] sm:$0xf]
                  %1742 = vst [vmem:[%s1652 + $0x130] sm:$0xf] %v1741
                  %v1743 = vld [vmem:[%s1651 + $0xb4] sm:$0xf]
                  %1744 = vst [vmem:[%s1652 + $0x134] sm:$0xf] %v1743
                  %v1745 = vld [vmem:[%s1651 + $0xb8] sm:$0xf]
                  %1746 = vst [vmem:[%s1652 + $0x138] sm:$0xf] %v1745
                  %v1747 = vld [vmem:[%s1651 + $0xbc] sm:$0xf]
                  %1748 = vst [vmem:[%s1652 + $0x13c] sm:$0xf] %v1747
                  %v1749 = vld [vmem:[%s1651 + $0xc0] sm:$0xf]
                  %1750 = vst [vmem:[%s1652 + $0x180] sm:$0xf] %v1749
                  %v1751 = vld [vmem:[%s1651 + $0xc4] sm:$0xf]
                  %1752 = vst [vmem:[%s1652 + $0x184] sm:$0xf] %v1751
                  %v1753 = vld [vmem:[%s1651 + $0xc8] sm:$0xf]
                  %1754 = vst [vmem:[%s1652 + $0x188] sm:$0xf] %v1753
                  %v1755 = vld [vmem:[%s1651 + $0xcc] sm:$0xf]
                  %1756 = vst [vmem:[%s1652 + $0x18c] sm:$0xf] %v1755
                  %v1757 = vld [vmem:[%s1651 + $0xd0] sm:$0xf]
                  %1758 = vst [vmem:[%s1652 + $0x190] sm:$0xf] %v1757
                  %v1759 = vld [vmem:[%s1651 + $0xd4] sm:$0xf]
                  %1760 = vst [vmem:[%s1652 + $0x194] sm:$0xf] %v1759
                  %v1761 = vld [vmem:[%s1651 + $0xd8] sm:$0xf]
                  %1762 = vst [vmem:[%s1652 + $0x198] sm:$0xf] %v1761
                  %v1763 = vld [vmem:[%s1651 + $0xdc] sm:$0xf]
                  %1764 = vst [vmem:[%s1652 + $0x19c] sm:$0xf] %v1763
                  %v1765 = vld [vmem:[%s1651 + $0xe0] sm:$0xf]
                  %1766 = vst [vmem:[%s1652 + $0x1a0] sm:$0xf] %v1765
                  %v1767 = vld [vmem:[%s1651 + $0xe4] sm:$0xf]
                  %1768 = vst [vmem:[%s1652 + $0x1a4] sm:$0xf] %v1767
                  %v1769 = vld [vmem:[%s1651 + $0xe8] sm:$0xf]
                  %1770 = vst [vmem:[%s1652 + $0x1a8] sm:$0xf] %v1769
                  %v1771 = vld [vmem:[%s1651 + $0xec] sm:$0xf]
                  %1772 = vst [vmem:[%s1652 + $0x1ac] sm:$0xf] %v1771
                  %v1773 = vld [vmem:[%s1651 + $0xf0] sm:$0xf]
                  %1774 = vst [vmem:[%s1652 + $0x1b0] sm:$0xf] %v1773
                  %v1775 = vld [vmem:[%s1651 + $0xf4] sm:$0xf]
                  %1776 = vst [vmem:[%s1652 + $0x1b4] sm:$0xf] %v1775
                  %v1777 = vld [vmem:[%s1651 + $0xf8] sm:$0xf]
                  %1778 = vst [vmem:[%s1652 + $0x1b8] sm:$0xf] %v1777
                  %v1779 = vld [vmem:[%s1651 + $0xfc] sm:$0xf]
                  %1780 = vst [vmem:[%s1652 + $0x1bc] sm:$0xf] %v1779
                $region79: #{tpu_custom_call.1} parent=66 // loop_footer
                  %s1650 = sadd.s32 1, %s1646
                $region80: #{tpu_custom_call.1} parent=66 // loop_footer_branch
                  %1645 = sbr.rel target = $region76
                $region81: #{tpu_custom_call.1} parent=66 // loop_exit
                  _
              $region67: #{tpu_custom_call.1} parent=51 // pred_fallthru
                _
            $region52: #{tpu_custom_call.1} parent=47 // pred_fallthru
              _
            // Predicated region
            $region53: #{tpu_custom_call.1} parent=47 // pred_check
              _
            $region54: #{tpu_custom_call.1} parent=47 // pred_check_branch
              %1496 = sbr.rel (0) target = $region56
            $region55: #{tpu_custom_call.1} parent=47 // pred_region
              loop: start=0, step=1, limit=1
              $region57: #{tpu_custom_call.1} parent=55 // loop_pre_header
                _
              $region58: #{tpu_custom_call.1} parent=55 // loop_header
                %s1499 = sphi 0, %s1503
                %p1500 = scmp.ge.s32.totalorder %s1499, 1
                %s1504 = sphi %s1467, %s1467
                %s1505 = sphi %s1490, %s1490
              $region59: #{tpu_custom_call.1} parent=55 // loop_header_branch
                %1502 = sbr.rel (%p1500) target = $region63
              $region60: #{tpu_custom_call.1} parent=55 // loop_body
                %v1506 = vld [vmem:[%s1504] sm:$0xf]
                %1507 = vst [vmem:[%s1505] sm:$0xf] %v1506
                %v1508 = vld [vmem:[%s1504 + $0x4] sm:$0xf]
                %1509 = vst [vmem:[%s1505 + $0x4] sm:$0xf] %v1508
                %v1510 = vld [vmem:[%s1504 + $0x8] sm:$0xf]
                %1511 = vst [vmem:[%s1505 + $0x8] sm:$0xf] %v1510
                %v1512 = vld [vmem:[%s1504 + $0xc] sm:$0xf]
                %1513 = vst [vmem:[%s1505 + $0xc] sm:$0xf] %v1512
                %v1514 = vld [vmem:[%s1504 + $0x10] sm:$0xf]
                %1515 = vst [vmem:[%s1505 + $0x10] sm:$0xf] %v1514
                %v1516 = vld [vmem:[%s1504 + $0x14] sm:$0xf]
                %1517 = vst [vmem:[%s1505 + $0x14] sm:$0xf] %v1516
                %v1518 = vld [vmem:[%s1504 + $0x18] sm:$0xf]
                %1519 = vst [vmem:[%s1505 + $0x18] sm:$0xf] %v1518
                %v1520 = vld [vmem:[%s1504 + $0x1c] sm:$0xf]
                %1521 = vst [vmem:[%s1505 + $0x1c] sm:$0xf] %v1520
                %v1522 = vld [vmem:[%s1504 + $0x20] sm:$0xf]
                %1523 = vst [vmem:[%s1505 + $0x20] sm:$0xf] %v1522
                %v1524 = vld [vmem:[%s1504 + $0x24] sm:$0xf]
                %1525 = vst [vmem:[%s1505 + $0x24] sm:$0xf] %v1524
                %v1526 = vld [vmem:[%s1504 + $0x28] sm:$0xf]
                %1527 = vst [vmem:[%s1505 + $0x28] sm:$0xf] %v1526
                %v1528 = vld [vmem:[%s1504 + $0x2c] sm:$0xf]
                %1529 = vst [vmem:[%s1505 + $0x2c] sm:$0xf] %v1528
                %v1530 = vld [vmem:[%s1504 + $0x30] sm:$0xf]
                %1531 = vst [vmem:[%s1505 + $0x30] sm:$0xf] %v1530
                %v1532 = vld [vmem:[%s1504 + $0x34] sm:$0xf]
                %1533 = vst [vmem:[%s1505 + $0x34] sm:$0xf] %v1532
                %v1534 = vld [vmem:[%s1504 + $0x38] sm:$0xf]
                %1535 = vst [vmem:[%s1505 + $0x38] sm:$0xf] %v1534
                %v1536 = vld [vmem:[%s1504 + $0x3c] sm:$0xf]
                %1537 = vst [vmem:[%s1505 + $0x3c] sm:$0xf] %v1536
                %v1538 = vld [vmem:[%s1504 + $0x40] sm:$0xf]
                %1539 = vst [vmem:[%s1505 + $0x80] sm:$0xf] %v1538
                %v1540 = vld [vmem:[%s1504 + $0x44] sm:$0xf]
                %1541 = vst [vmem:[%s1505 + $0x84] sm:$0xf] %v1540
                %v1542 = vld [vmem:[%s1504 + $0x48] sm:$0xf]
                %1543 = vst [vmem:[%s1505 + $0x88] sm:$0xf] %v1542
                %v1544 = vld [vmem:[%s1504 + $0x4c] sm:$0xf]
                %1545 = vst [vmem:[%s1505 + $0x8c] sm:$0xf] %v1544
                %v1546 = vld [vmem:[%s1504 + $0x50] sm:$0xf]
                %1547 = vst [vmem:[%s1505 + $0x90] sm:$0xf] %v1546
                %v1548 = vld [vmem:[%s1504 + $0x54] sm:$0xf]
                %1549 = vst [vmem:[%s1505 + $0x94] sm:$0xf] %v1548
                %v1550 = vld [vmem:[%s1504 + $0x58] sm:$0xf]
                %1551 = vst [vmem:[%s1505 + $0x98] sm:$0xf] %v1550
                %v1552 = vld [vmem:[%s1504 + $0x5c] sm:$0xf]
                %1553 = vst [vmem:[%s1505 + $0x9c] sm:$0xf] %v1552
                %v1554 = vld [vmem:[%s1504 + $0x60] sm:$0xf]
                %1555 = vst [vmem:[%s1505 + $0xa0] sm:$0xf] %v1554
                %v1556 = vld [vmem:[%s1504 + $0x64] sm:$0xf]
                %1557 = vst [vmem:[%s1505 + $0xa4] sm:$0xf] %v1556
                %v1558 = vld [vmem:[%s1504 + $0x68] sm:$0xf]
                %1559 = vst [vmem:[%s1505 + $0xa8] sm:$0xf] %v1558
                %v1560 = vld [vmem:[%s1504 + $0x6c] sm:$0xf]
                %1561 = vst [vmem:[%s1505 + $0xac] sm:$0xf] %v1560
                %v1562 = vld [vmem:[%s1504 + $0x70] sm:$0xf]
                %1563 = vst [vmem:[%s1505 + $0xb0] sm:$0xf] %v1562
                %v1564 = vld [vmem:[%s1504 + $0x74] sm:$0xf]
                %1565 = vst [vmem:[%s1505 + $0xb4] sm:$0xf] %v1564
                %v1566 = vld [vmem:[%s1504 + $0x78] sm:$0xf]
                %1567 = vst [vmem:[%s1505 + $0xb8] sm:$0xf] %v1566
                %v1568 = vld [vmem:[%s1504 + $0x7c] sm:$0xf]
                %1569 = vst [vmem:[%s1505 + $0xbc] sm:$0xf] %v1568
                %v1570 = vld [vmem:[%s1504 + $0x80] sm:$0xf]
                %1571 = vst [vmem:[%s1505 + $0x100] sm:$0xf] %v1570
                %v1572 = vld [vmem:[%s1504 + $0x84] sm:$0xf]
                %1573 = vst [vmem:[%s1505 + $0x104] sm:$0xf] %v1572
                %v1574 = vld [vmem:[%s1504 + $0x88] sm:$0xf]
                %1575 = vst [vmem:[%s1505 + $0x108] sm:$0xf] %v1574
                %v1576 = vld [vmem:[%s1504 + $0x8c] sm:$0xf]
                %1577 = vst [vmem:[%s1505 + $0x10c] sm:$0xf] %v1576
                %v1578 = vld [vmem:[%s1504 + $0x90] sm:$0xf]
                %1579 = vst [vmem:[%s1505 + $0x110] sm:$0xf] %v1578
                %v1580 = vld [vmem:[%s1504 + $0x94] sm:$0xf]
                %1581 = vst [vmem:[%s1505 + $0x114] sm:$0xf] %v1580
                %v1582 = vld [vmem:[%s1504 + $0x98] sm:$0xf]
                %1583 = vst [vmem:[%s1505 + $0x118] sm:$0xf] %v1582
                %v1584 = vld [vmem:[%s1504 + $0x9c] sm:$0xf]
                %1585 = vst [vmem:[%s1505 + $0x11c] sm:$0xf] %v1584
                %v1586 = vld [vmem:[%s1504 + $0xa0] sm:$0xf]
                %1587 = vst [vmem:[%s1505 + $0x120] sm:$0xf] %v1586
                %v1588 = vld [vmem:[%s1504 + $0xa4] sm:$0xf]
                %1589 = vst [vmem:[%s1505 + $0x124] sm:$0xf] %v1588
                %v1590 = vld [vmem:[%s1504 + $0xa8] sm:$0xf]
                %1591 = vst [vmem:[%s1505 + $0x128] sm:$0xf] %v1590
                %v1592 = vld [vmem:[%s1504 + $0xac] sm:$0xf]
                %1593 = vst [vmem:[%s1505 + $0x12c] sm:$0xf] %v1592
                %v1594 = vld [vmem:[%s1504 + $0xb0] sm:$0xf]
                %1595 = vst [vmem:[%s1505 + $0x130] sm:$0xf] %v1594
                %v1596 = vld [vmem:[%s1504 + $0xb4] sm:$0xf]
                %1597 = vst [vmem:[%s1505 + $0x134] sm:$0xf] %v1596
                %v1598 = vld [vmem:[%s1504 + $0xb8] sm:$0xf]
                %1599 = vst [vmem:[%s1505 + $0x138] sm:$0xf] %v1598
                %v1600 = vld [vmem:[%s1504 + $0xbc] sm:$0xf]
                %1601 = vst [vmem:[%s1505 + $0x13c] sm:$0xf] %v1600
                %v1602 = vld [vmem:[%s1504 + $0xc0] sm:$0xf]
                %1603 = vst [vmem:[%s1505 + $0x180] sm:$0xf] %v1602
                %v1604 = vld [vmem:[%s1504 + $0xc4] sm:$0xf]
                %1605 = vst [vmem:[%s1505 + $0x184] sm:$0xf] %v1604
                %v1606 = vld [vmem:[%s1504 + $0xc8] sm:$0xf]
                %1607 = vst [vmem:[%s1505 + $0x188] sm:$0xf] %v1606
                %v1608 = vld [vmem:[%s1504 + $0xcc] sm:$0xf]
                %1609 = vst [vmem:[%s1505 + $0x18c] sm:$0xf] %v1608
                %v1610 = vld [vmem:[%s1504 + $0xd0] sm:$0xf]
                %1611 = vst [vmem:[%s1505 + $0x190] sm:$0xf] %v1610
                %v1612 = vld [vmem:[%s1504 + $0xd4] sm:$0xf]
                %1613 = vst [vmem:[%s1505 + $0x194] sm:$0xf] %v1612
                %v1614 = vld [vmem:[%s1504 + $0xd8] sm:$0xf]
                %1615 = vst [vmem:[%s1505 + $0x198] sm:$0xf] %v1614
                %v1616 = vld [vmem:[%s1504 + $0xdc] sm:$0xf]
                %1617 = vst [vmem:[%s1505 + $0x19c] sm:$0xf] %v1616
                %v1618 = vld [vmem:[%s1504 + $0xe0] sm:$0xf]
                %1619 = vst [vmem:[%s1505 + $0x1a0] sm:$0xf] %v1618
                %v1620 = vld [vmem:[%s1504 + $0xe4] sm:$0xf]
                %1621 = vst [vmem:[%s1505 + $0x1a4] sm:$0xf] %v1620
                %v1622 = vld [vmem:[%s1504 + $0xe8] sm:$0xf]
                %1623 = vst [vmem:[%s1505 + $0x1a8] sm:$0xf] %v1622
                %v1624 = vld [vmem:[%s1504 + $0xec] sm:$0xf]
                %1625 = vst [vmem:[%s1505 + $0x1ac] sm:$0xf] %v1624
                %v1626 = vld [vmem:[%s1504 + $0xf0] sm:$0xf]
                %1627 = vst [vmem:[%s1505 + $0x1b0] sm:$0xf] %v1626
                %v1628 = vld [vmem:[%s1504 + $0xf4] sm:$0xf]
                %1629 = vst [vmem:[%s1505 + $0x1b4] sm:$0xf] %v1628
                %v1630 = vld [vmem:[%s1504 + $0xf8] sm:$0xf]
                %1631 = vst [vmem:[%s1505 + $0x1b8] sm:$0xf] %v1630
                %v1632 = vld [vmem:[%s1504 + $0xfc] sm:$0xf]
                %1633 = vst [vmem:[%s1505 + $0x1bc] sm:$0xf] %v1632
              $region61: #{tpu_custom_call.1} parent=55 // loop_footer
                %s1503 = sadd.s32 1, %s1499
              $region62: #{tpu_custom_call.1} parent=55 // loop_footer_branch
                %1498 = sbr.rel target = $region58
              $region63: #{tpu_custom_call.1} parent=55 // loop_exit
                _
            $region56: #{tpu_custom_call.1} parent=47 // pred_fallthru
              _
          $region48: #{tpu_custom_call.1} parent=43 // pred_fallthru
            _
          %1781 = vnop
        $region44: #{tpu_custom_call.1} parent=31 // pred_fallthru
          _
      $region32: #{tpu_custom_call.1} parent=5 // pred_fallthru
        _
      %p1782 = scmp.le.s32.totalorder 2, %s15
      // Predicated region
      $region82: #{tpu_custom_call.1} parent=5 // pred_check
        %p1783 = pneg %p1782
      $region83: #{tpu_custom_call.1} parent=5 // pred_check_branch
        %1785 = sbr.rel (%p1783) target = $region85
      $region84: #{tpu_custom_call.1} parent=5 // pred_region
        %s1786 = ssub.s32 %s15, 2
        // Predicated region
        $region86: #{tpu_custom_call.1} parent=84 // pred_check
          %p1787 = pneg %p112
        $region87: #{tpu_custom_call.1} parent=84 // pred_check_branch
          %1789 = sbr.rel (%p1787) target = $region89
        $region88: #{tpu_custom_call.1} parent=84 // pred_region
          %s1790 = smul.u32 16, %s21
          %p1791 = scmp.lt.s32.totalorder %s1790, 31
          %s1792 = scalar_select %p1791, %s1790, 31
          %s1793 = smul.addr %s1792, 8
          %s1794 = scalar_lea.vmem %s3, %s1793
        $region89: #{tpu_custom_call.1} parent=84 // pred_fallthru
          _
        // Predicated region
        $region90: #{tpu_custom_call.1} parent=84 // pred_check
          %p1795 = pneg %p138
        $region91: #{tpu_custom_call.1} parent=84 // pred_check_branch
          %1797 = sbr.rel (%p1795) target = $region93
        $region92: #{tpu_custom_call.1} parent=84 // pred_region
          %s1798 = sand.u32 %s123, 1
          %s1799 = scalar_lea.sflag [#allocation3], %s1798
          %s1800 = sand.u32 %s123, 1
          %s1801 = smul.addr %s1800, 4
          %s1802 = scalar_lea.vmem [#allocation2], %s1801
          %1803 = dma.done %s1799, 64
        $region93: #{tpu_custom_call.1} parent=84 // pred_fallthru
          _
        // Predicated region
        $region94: #{tpu_custom_call.1} parent=84 // pred_check
          %p1804 = pneg %p164
        $region95: #{tpu_custom_call.1} parent=84 // pred_check_branch
          %1806 = sbr.rel (%p1804) target = $region97
        $region96: #{tpu_custom_call.1} parent=84 // pred_region
          %s1807 = sand.u32 %s149, 1
          %s1808 = sand.u32 %s149, 1
          %s1809 = smul.addr %s1808, 256
          %s1810 = scalar_lea.vmem [#allocation4], %s1809
        $region97: #{tpu_custom_call.1} parent=84 // pred_fallthru
          _
      $region85: #{tpu_custom_call.1} parent=5 // pred_fallthru
        _
    $region6: #{tpu_custom_call.1} parent=1 // loop_footer
      %s19 = sadd.s32 1, %s15
    $region7: #{tpu_custom_call.1} parent=1 // loop_footer_branch
      %14 = sbr.rel target = $region3
    $region8: #{tpu_custom_call.1} parent=1 // loop_exit
      _
    %1811 = vsyncpa [#allocation3], 1
    %s1812 = scalar_lea.sflag [#allocation3], 1
    %1813 = vsyncpa %s1812, 1

</llo_original>
